<compile_context>
chip_gen: v5e
topology: v5e:2x2
jax: 0.10.0
libtpu: 0.0.40
codegen_flags: <defaults>
</compile_context>

<pallas_src>
import functools

import jax
import jax.numpy as jnp
from jax.experimental import pallas as pl
from jax.experimental.pallas import tpu as pltpu


# ----------------------------------------------------------------------------- kernel
def gnn_kernel(
    # per-graph data (one grid step == one graph)
    x_ref, a_ref, gf_ref,
    # mean-pool row: (1/N) * ones, shape [1, N]
    pool_ref,
    # GCN conv weights (stored [in, out]) and biases ([1, out])
    w1_ref, b1_ref, w2_ref, b2_ref, w3_ref, b3_ref,
    # global-feature MLP branch
    fcgw_ref, fcgb_ref, fc3w_ref, fc3b_ref, fc4w_ref, fc4b_ref,
    # folded graph head (fc1 @ fc2 @ fc_final[:128]) and fc_final[128:], lane-padded
    whead_ref, bhead_ref, wfbot_ref,
    # output [G, out_pad]
    out_ref,
):
    f32 = jnp.float32
    relu = lambda t: jnp.maximum(t, 0.0)
    mm = functools.partial(jnp.dot, preferred_element_type=f32)

    x = x_ref[...]          # [N, F_in]
    a = a_ref[...]          # [N, N]  normalized adjacency (with self loops)

    # conv1 -> ReLU ; conv2 / conv3 have no activation (matches reference)
    h = relu(mm(a, mm(x, w1_ref[...])) + b1_ref[...])
    h = mm(a, mm(h, w2_ref[...])) + b2_ref[...]
    h = mm(a, mm(h, w3_ref[...])) + b3_ref[...]          # [N, 32]

    # global mean pool over nodes as an MXU matmul (pool_ref = (1/N)*ones[1,N])
    mean_h = mm(pool_ref[...], h)                        # [1, 32]

    # folded graph head: fc1 -> fc2 -> fc_final[:128,:] collapsed into one matmul
    graph_contrib = mm(mean_h, whead_ref[...]) + bhead_ref[...]   # [1, out_pad]

    # global-feature branch
    gl = relu(mm(gf_ref[...], fcgw_ref[...]) + fcgb_ref[...])     # [G, 64]
    gl = relu(mm(gl, fc3w_ref[...]) + fc3b_ref[...])              # [G, 128]
    gl = relu(mm(gl, fc4w_ref[...]) + fc4b_ref[...])              # [G, 256]

    # final layer: gl @ fc_final[128:,:] + (folded graph contribution, broadcast over G)
    out = mm(gl, wfbot_ref[...]) + graph_contrib                  # [G, out_pad]
    out_ref[...] = relu(out)


# ----------------------------------------------------------------------------- wrapper
def _fold_head_params(params, out_pad):
    """Collapse fc1 -> fc2 -> fc_final[:128,:] (no nonlinearities between them) into a
    single [32, out_pad] weight + [1, out_pad] bias; lane-pad fc_final pieces to out_pad."""
    hp = functools.partial(jnp.dot, precision=jax.lax.Precision.HIGHEST)
    wf_top = params["fcf_w"][:128, :]
    wf_bot = params["fcf_w"][128:, :]
    w_head = hp(hp(params["fc1_w"], params["fc2_w"]), wf_top)                       # [32, out]
    b_head = hp(hp(params["fc1_b"], params["fc2_w"]) + params["fc2_b"], wf_top)     # [1, out]
    b_head = b_head + params["fcf_b"]
    num_output = params["fcf_b"].shape[-1]
    pad = out_pad - num_output
    w_head = jnp.pad(w_head, ((0, 0), (0, pad)))
    b_head = jnp.pad(b_head, ((0, 0), (0, pad)))
    wf_bot = jnp.pad(wf_bot, ((0, 0), (0, pad)))
    return w_head, b_head, wf_bot


def build_normalized_adjacency(edge_index, n):
    """Dense \\hat{A} = D^-1/2 (A + I) D^-1/2 (PyG GCNConv default), JAX glue."""
    src, dst = edge_index[0], edge_index[1]
    adj = jnp.zeros((n, n), jnp.float32).at[dst, src].set(1.0)
    adj = adj + jnp.eye(n, dtype=jnp.float32)            # add self loops
    deg = jnp.sum(adj, axis=1)
    dinv = jnp.where(deg > 0, 1.0 / jnp.sqrt(deg), 0.0)
    return dinv[:, None] * adj * dinv[None, :]


def gnn_forward_batched(x, a_hat, global_features, params):
    """Batched forward: x [B,N,F_in], a_hat [B,N,N], global_features [B,G,F_glob].
    Returns [B, G, num_output]. One grid step per graph ('parallel' -> 2 TCs on v7x)."""
    B, N, _ = x.shape
    _, G, _ = global_features.shape
    num_output = params["fcf_b"].shape[-1]
    out_pad = max(128, ((num_output + 127) // 128) * 128)   # lane-dense output block

    w_head, b_head, wf_bot = _fold_head_params(params, out_pad)
    pool = jnp.full((1, N), 1.0 / N, jnp.float32)

    weights = [
        pool,
        params["w1"], params["b1"], params["w2"], params["b2"], params["w3"], params["b3"],
        params["fcg_w"], params["fcg_b"], params["fc3_w"], params["fc3_b"],
        params["fc4_w"], params["fc4_b"],
        w_head, b_head, wf_bot,
    ]

    def per_graph(shape):
        nd = len(shape)
        return pl.BlockSpec((None,) + tuple(shape[1:]),
                            lambda b, _nd=nd: (b,) + (0,) * (_nd - 1))

    def resident(arr):
        nd = arr.ndim
        return pl.BlockSpec(arr.shape, lambda b, _nd=nd: (0,) * _nd)

    in_specs = [per_graph(x.shape), per_graph(a_hat.shape), per_graph(global_features.shape)]
    in_specs += [resident(w) for w in weights]

    out_padded = pl.pallas_call(
        gnn_kernel,
        grid=(B,),
        out_shape=jax.ShapeDtypeStruct((B, G, out_pad), jnp.float32),
        in_specs=in_specs,
        out_specs=pl.BlockSpec((None, G, out_pad), lambda b: (b, 0, 0)),
        compiler_params=pltpu.CompilerParams(
            dimension_semantics=("parallel",),   # shard the graph batch across TCs (v7x)
        ),
    )(x, a_hat, global_features, *weights)

    return out_padded[..., :num_output]


def gnn_forward(x, edge_index, global_features, params):
    """Single-graph forward (builds the normalized adjacency, then runs the batched kernel)."""
    a_hat = build_normalized_adjacency(edge_index, x.shape[0])
    out = gnn_forward_batched(x[None], a_hat[None], global_features[None], params)
    return out[0]


# ----------------------------------------------------------------------------- params
def init_params(key, num_node_features, num_global_features, num_output):
    """Deterministic synthetic init.  Linear/GCN weights stored [in, out]; biases [1, out]."""
    shapes = {
        "w1": (num_node_features, 16), "b1": (1, 16),
        "w2": (16, 32), "b2": (1, 32),
        "w3": (32, 32), "b3": (1, 32),
        "fc1_w": (32, 64), "fc1_b": (1, 64),
        "fc2_w": (64, 128), "fc2_b": (1, 128),
        "fcg_w": (num_global_features, 64), "fcg_b": (1, 64),
        "fc3_w": (64, 128), "fc3_b": (1, 128),
        "fc4_w": (128, 256), "fc4_b": (1, 256),
        "fcf_w": (384, num_output), "fcf_b": (1, num_output),
    }
    params = {}
    keys = jax.random.split(key, len(shapes))
    for k, (name, shp) in zip(keys, sorted(shapes.items())):
        scale = 1.0 / jnp.sqrt(jnp.float32(shp[0])) if (name.endswith("_w") or name.startswith("w")) else 0.1
        params[name] = (scale * jax.random.normal(k, shp)).astype(jnp.float32)
    return params


# ----------------------------------------------------------------------------- reference (plain JAX)
def gnn_reference(x, edge_index, global_features, params):
    a_hat = build_normalized_adjacency(edge_index, x.shape[0])
    relu = lambda t: jnp.maximum(t, 0.0)
    h = relu(a_hat @ (x @ params["w1"]) + params["b1"])
    h = a_hat @ (h @ params["w2"]) + params["b2"]
    h = a_hat @ (h @ params["w3"]) + params["b3"]
    g = jnp.mean(h, axis=0, keepdims=True)
    g = g @ params["fc1_w"] + params["fc1_b"]
    g = g @ params["fc2_w"] + params["fc2_b"]
    graph_feat = jnp.repeat(g, global_features.shape[0], axis=0)
    gl = relu(global_features @ params["fcg_w"] + params["fcg_b"])
    gl = relu(gl @ params["fc3_w"] + params["fc3_b"])
    gl = relu(gl @ params["fc4_w"] + params["fc4_b"])
    combined = jnp.concatenate([graph_feat, gl], axis=1)
    return relu(combined @ params["fcf_w"] + params["fcf_b"])


# ----------------------------------------------------------------------------- main
if __name__ == "__main__":
    NUM_NODE_FEATURES = 4
    NUM_GLOBAL_FEATURES = 6
    NUM_OUTPUT = 10
    N_NODES = 8
    N_GLOBAL_ROWS = 2
    N_GRAPHS = 4

    key = jax.random.PRNGKey(0)
    k_x, k_g, k_p = jax.random.split(key, 3)

    xs = jax.random.normal(k_x, (N_GRAPHS, N_NODES, NUM_NODE_FEATURES), jnp.float32)
    gfs = jax.random.normal(k_g, (N_GRAPHS, N_GLOBAL_ROWS, NUM_GLOBAL_FEATURES), jnp.float32)

    # deterministic per-graph ring graphs (each with a different stride) as edge_index [2, E]
    edge_indices = []
    for b in range(N_GRAPHS):
        srcs = jnp.arange(N_NODES, dtype=jnp.int32)
        dsts = (srcs + 1 + b) % N_NODES
        edge_indices.append(
            jnp.concatenate(
                [jnp.stack([srcs, dsts], axis=0), jnp.stack([dsts, srcs], axis=0)], axis=1
            )
        )

    params = init_params(k_p, NUM_NODE_FEATURES, NUM_GLOBAL_FEATURES, NUM_OUTPUT)

    # normalized adjacencies (JAX glue), stacked for the batched grid kernel
    a_hats = jnp.stack(
        [build_normalized_adjacency(ei, N_NODES) for ei in edge_indices], axis=0
    )

    # batched kernel: one pallas_call, grid over graphs
    out_batched = gnn_forward_batched(xs, a_hats, gfs, params)
    out_batched = jax.block_until_ready(out_batched)
    assert out_batched.shape == (N_GRAPHS, N_GLOBAL_ROWS, NUM_OUTPUT), out_batched.shape

    # single-graph convenience wrapper (same kernel, B=1)
    out_single = jax.block_until_ready(gnn_forward(xs[0], edge_indices[0], gfs[0], params))
    assert out_single.shape == (N_GLOBAL_ROWS, NUM_OUTPUT), out_single.shape

    # validate against plain-JAX reference, per graph
    for b in range(N_GRAPHS):
        ref = gnn_reference(xs[b], edge_indices[b], gfs[b], params)
        assert jnp.allclose(out_batched[b], ref, atol=1e-3, rtol=1e-3), f"mismatch graph {b}"
    assert jnp.allclose(out_single, gnn_reference(xs[0], edge_indices[0], gfs[0], params),
                        atol=1e-3, rtol=1e-3), "mismatch single-graph path"

    print("KERNEL_OK")
</pallas_src>

<mosaic_0001>
module attributes {stable_mosaic.version = 11 : i64} {
  func.func @gnn_kernel(%arg0: i32, %arg1: memref<1x8x4xf32, #tpu.memory_space<vmem>>, %arg2: memref<1x8x8xf32, #tpu.memory_space<vmem>>, %arg3: memref<1x2x6xf32, #tpu.memory_space<vmem>>, %arg4: memref<1x8xf32, #tpu.memory_space<vmem>>, %arg5: memref<4x16xf32, #tpu.memory_space<vmem>>, %arg6: memref<1x16xf32, #tpu.memory_space<vmem>>, %arg7: memref<16x32xf32, #tpu.memory_space<vmem>>, %arg8: memref<1x32xf32, #tpu.memory_space<vmem>>, %arg9: memref<32x32xf32, #tpu.memory_space<vmem>>, %arg10: memref<1x32xf32, #tpu.memory_space<vmem>>, %arg11: memref<6x64xf32, #tpu.memory_space<vmem>>, %arg12: memref<1x64xf32, #tpu.memory_space<vmem>>, %arg13: memref<64x128xf32, #tpu.memory_space<vmem>>, %arg14: memref<1x128xf32, #tpu.memory_space<vmem>>, %arg15: memref<128x256xf32, #tpu.memory_space<vmem>>, %arg16: memref<1x256xf32, #tpu.memory_space<vmem>>, %arg17: memref<32x128xf32, #tpu.memory_space<vmem>>, %arg18: memref<1x128xf32, #tpu.memory_space<vmem>>, %arg19: memref<256x128xf32, #tpu.memory_space<vmem>>, %arg20: memref<1x2x128xf32, #tpu.memory_space<vmem>>) attributes {dimension_semantics = [#tpu.dimension_semantics<parallel>], iteration_bounds = array<i64: 4>, scalar_prefetch = 0 : i64, scratch_operands = 0 : i64, tpu.core_type = #tpu.core_type<tc>, window_params = [{transform_indices = @transform_0, window_bounds = array<i64: 1, 8, 4>}, {transform_indices = @transform_1, window_bounds = array<i64: 1, 8, 8>}, {transform_indices = @transform_2, window_bounds = array<i64: 1, 2, 6>}, {pipeline_mode = #tpu.pipeline_mode<synchronous>, transform_indices = @transform_3, window_bounds = array<i64: 1, 8>}, {pipeline_mode = #tpu.pipeline_mode<synchronous>, transform_indices = @transform_4, window_bounds = array<i64: 4, 16>}, {pipeline_mode = #tpu.pipeline_mode<synchronous>, transform_indices = @transform_5, window_bounds = array<i64: 1, 16>}, {pipeline_mode = #tpu.pipeline_mode<synchronous>, transform_indices = @transform_6, window_bounds = array<i64: 16, 32>}, {pipeline_mode = #tpu.pipeline_mode<synchronous>, transform_indices = @transform_7, window_bounds = array<i64: 1, 32>}, {pipeline_mode = #tpu.pipeline_mode<synchronous>, transform_indices = @transform_8, window_bounds = array<i64: 32, 32>}, {pipeline_mode = #tpu.pipeline_mode<synchronous>, transform_indices = @transform_9, window_bounds = array<i64: 1, 32>}, {pipeline_mode = #tpu.pipeline_mode<synchronous>, transform_indices = @transform_10, window_bounds = array<i64: 6, 64>}, {pipeline_mode = #tpu.pipeline_mode<synchronous>, transform_indices = @transform_11, window_bounds = array<i64: 1, 64>}, {pipeline_mode = #tpu.pipeline_mode<synchronous>, transform_indices = @transform_12, window_bounds = array<i64: 64, 128>}, {pipeline_mode = #tpu.pipeline_mode<synchronous>, transform_indices = @transform_13, window_bounds = array<i64: 1, 128>}, {pipeline_mode = #tpu.pipeline_mode<synchronous>, transform_indices = @transform_14, window_bounds = array<i64: 128, 256>}, {pipeline_mode = #tpu.pipeline_mode<synchronous>, transform_indices = @transform_15, window_bounds = array<i64: 1, 256>}, {pipeline_mode = #tpu.pipeline_mode<synchronous>, transform_indices = @transform_16, window_bounds = array<i64: 32, 128>}, {pipeline_mode = #tpu.pipeline_mode<synchronous>, transform_indices = @transform_17, window_bounds = array<i64: 1, 128>}, {pipeline_mode = #tpu.pipeline_mode<synchronous>, transform_indices = @transform_18, window_bounds = array<i64: 256, 128>}, {transform_indices = @transform_19, window_bounds = array<i64: 1, 2, 128>}]} {
    %c0 = arith.constant 0 : index
    %c0_0 = arith.constant 0 : index
    %c0_1 = arith.constant 0 : index
    %0 = vector.load %arg1[%c0, %c0_0, %c0_1] : memref<1x8x4xf32, #tpu.memory_space<vmem>>, vector<1x8x4xf32>
    %1 = vector.shape_cast %0 : vector<1x8x4xf32> to vector<8x4xf32>
    %c0_2 = arith.constant 0 : index
    %c0_3 = arith.constant 0 : index
    %c0_4 = arith.constant 0 : index
    %2 = vector.load %arg2[%c0_2, %c0_3, %c0_4] : memref<1x8x8xf32, #tpu.memory_space<vmem>>, vector<1x8x8xf32>
    %3 = vector.shape_cast %2 : vector<1x8x8xf32> to vector<8x8xf32>
    %c0_5 = arith.constant 0 : index
    %c0_6 = arith.constant 0 : index
    %4 = vector.load %arg5[%c0_5, %c0_6] : memref<4x16xf32, #tpu.memory_space<vmem>>, vector<4x16xf32>
    %cst = arith.constant dense<0.000000e+00> : vector<8x16xf32>
    %5 = tpu.matmul %1, %4, %cst {dimension_numbers = #tpu.dot_dimension_numbers<[1], [0], [0], [1], [0, 0, 1, 1], [], []>} : vector<8x4xf32>, vector<4x16xf32>, vector<8x16xf32> -> vector<8x16xf32>
    %cst_7 = arith.constant dense<0.000000e+00> : vector<8x16xf32>
    %6 = tpu.matmul %3, %5, %cst_7 {dimension_numbers = #tpu.dot_dimension_numbers<[1], [0], [0], [1], [0, 0, 1, 1], [], []>} : vector<8x8xf32>, vector<8x16xf32>, vector<8x16xf32> -> vector<8x16xf32>
    %c0_8 = arith.constant 0 : index
    %c0_9 = arith.constant 0 : index
    %7 = vector.load %arg6[%c0_8, %c0_9] : memref<1x16xf32, #tpu.memory_space<vmem>>, vector<1x16xf32>
    %8 = vector.broadcast %7 : vector<1x16xf32> to vector<8x16xf32>
    %9 = arith.addf %6, %8 : vector<8x16xf32>
    %cst_10 = arith.constant 0.000000e+00 : f32
    %10 = vector.broadcast %cst_10 : f32 to vector<8x16xf32>
    %11 = arith.maximumf %9, %10 : vector<8x16xf32>
    %c0_11 = arith.constant 0 : index
    %c0_12 = arith.constant 0 : index
    %12 = vector.load %arg7[%c0_11, %c0_12] : memref<16x32xf32, #tpu.memory_space<vmem>>, vector<16x32xf32>
    %cst_13 = arith.constant dense<0.000000e+00> : vector<8x32xf32>
    %13 = tpu.matmul %11, %12, %cst_13 {dimension_numbers = #tpu.dot_dimension_numbers<[1], [0], [0], [1], [0, 0, 1, 1], [], []>} : vector<8x16xf32>, vector<16x32xf32>, vector<8x32xf32> -> vector<8x32xf32>
    %cst_14 = arith.constant dense<0.000000e+00> : vector<8x32xf32>
    %14 = tpu.matmul %3, %13, %cst_14 {dimension_numbers = #tpu.dot_dimension_numbers<[1], [0], [0], [1], [0, 0, 1, 1], [], []>} : vector<8x8xf32>, vector<8x32xf32>, vector<8x32xf32> -> vector<8x32xf32>
    %c0_15 = arith.constant 0 : index
    %c0_16 = arith.constant 0 : index
    %15 = vector.load %arg8[%c0_15, %c0_16] : memref<1x32xf32, #tpu.memory_space<vmem>>, vector<1x32xf32>
    %16 = vector.broadcast %15 : vector<1x32xf32> to vector<8x32xf32>
    %17 = arith.addf %14, %16 : vector<8x32xf32>
    %c0_17 = arith.constant 0 : index
    %c0_18 = arith.constant 0 : index
    %18 = vector.load %arg9[%c0_17, %c0_18] : memref<32x32xf32, #tpu.memory_space<vmem>>, vector<32x32xf32>
    %cst_19 = arith.constant dense<0.000000e+00> : vector<8x32xf32>
    %19 = tpu.matmul %17, %18, %cst_19 {dimension_numbers = #tpu.dot_dimension_numbers<[1], [0], [0], [1], [0, 0, 1, 1], [], []>} : vector<8x32xf32>, vector<32x32xf32>, vector<8x32xf32> -> vector<8x32xf32>
    %cst_20 = arith.constant dense<0.000000e+00> : vector<8x32xf32>
    %20 = tpu.matmul %3, %19, %cst_20 {dimension_numbers = #tpu.dot_dimension_numbers<[1], [0], [0], [1], [0, 0, 1, 1], [], []>} : vector<8x8xf32>, vector<8x32xf32>, vector<8x32xf32> -> vector<8x32xf32>
    %c0_21 = arith.constant 0 : index
    %c0_22 = arith.constant 0 : index
    %21 = vector.load %arg10[%c0_21, %c0_22] : memref<1x32xf32, #tpu.memory_space<vmem>>, vector<1x32xf32>
    %22 = vector.broadcast %21 : vector<1x32xf32> to vector<8x32xf32>
    %23 = arith.addf %20, %22 : vector<8x32xf32>
    %c0_23 = arith.constant 0 : index
    %c0_24 = arith.constant 0 : index
    %24 = vector.load %arg4[%c0_23, %c0_24] : memref<1x8xf32, #tpu.memory_space<vmem>>, vector<1x8xf32>
    %cst_25 = arith.constant dense<0.000000e+00> : vector<1x32xf32>
    %25 = tpu.matmul %24, %23, %cst_25 {dimension_numbers = #tpu.dot_dimension_numbers<[1], [0], [0], [1], [0, 0, 1, 1], [], []>} : vector<1x8xf32>, vector<8x32xf32>, vector<1x32xf32> -> vector<1x32xf32>
    %c0_26 = arith.constant 0 : index
    %c0_27 = arith.constant 0 : index
    %26 = vector.load %arg17[%c0_26, %c0_27] : memref<32x128xf32, #tpu.memory_space<vmem>>, vector<32x128xf32>
    %cst_28 = arith.constant dense<0.000000e+00> : vector<1x128xf32>
    %27 = tpu.matmul %25, %26, %cst_28 {dimension_numbers = #tpu.dot_dimension_numbers<[1], [0], [0], [1], [0, 0, 1, 1], [], []>} : vector<1x32xf32>, vector<32x128xf32>, vector<1x128xf32> -> vector<1x128xf32>
    %c0_29 = arith.constant 0 : index
    %c0_30 = arith.constant 0 : index
    %28 = vector.load %arg18[%c0_29, %c0_30] : memref<1x128xf32, #tpu.memory_space<vmem>>, vector<1x128xf32>
    %29 = arith.addf %27, %28 : vector<1x128xf32>
    %c0_31 = arith.constant 0 : index
    %c0_32 = arith.constant 0 : index
    %c0_33 = arith.constant 0 : index
    %30 = vector.load %arg3[%c0_31, %c0_32, %c0_33] : memref<1x2x6xf32, #tpu.memory_space<vmem>>, vector<1x2x6xf32>
    %31 = vector.shape_cast %30 : vector<1x2x6xf32> to vector<2x6xf32>
    %c0_34 = arith.constant 0 : index
    %c0_35 = arith.constant 0 : index
    %32 = vector.load %arg11[%c0_34, %c0_35] : memref<6x64xf32, #tpu.memory_space<vmem>>, vector<6x64xf32>
    %cst_36 = arith.constant dense<0.000000e+00> : vector<2x64xf32>
    %33 = tpu.matmul %31, %32, %cst_36 {dimension_numbers = #tpu.dot_dimension_numbers<[1], [0], [0], [1], [0, 0, 1, 1], [], []>} : vector<2x6xf32>, vector<6x64xf32>, vector<2x64xf32> -> vector<2x64xf32>
    %c0_37 = arith.constant 0 : index
    %c0_38 = arith.constant 0 : index
    %34 = vector.load %arg12[%c0_37, %c0_38] : memref<1x64xf32, #tpu.memory_space<vmem>>, vector<1x64xf32>
    %35 = vector.broadcast %34 : vector<1x64xf32> to vector<2x64xf32>
    %36 = arith.addf %33, %35 : vector<2x64xf32>
    %cst_39 = arith.constant 0.000000e+00 : f32
    %37 = vector.broadcast %cst_39 : f32 to vector<2x64xf32>
    %38 = arith.maximumf %36, %37 : vector<2x64xf32>
    %c0_40 = arith.constant 0 : index
    %c0_41 = arith.constant 0 : index
    %39 = vector.load %arg13[%c0_40, %c0_41] : memref<64x128xf32, #tpu.memory_space<vmem>>, vector<64x128xf32>
    %cst_42 = arith.constant dense<0.000000e+00> : vector<2x128xf32>
    %40 = tpu.matmul %38, %39, %cst_42 {dimension_numbers = #tpu.dot_dimension_numbers<[1], [0], [0], [1], [0, 0, 1, 1], [], []>} : vector<2x64xf32>, vector<64x128xf32>, vector<2x128xf32> -> vector<2x128xf32>
    %c0_43 = arith.constant 0 : index
    %c0_44 = arith.constant 0 : index
    %41 = vector.load %arg14[%c0_43, %c0_44] : memref<1x128xf32, #tpu.memory_space<vmem>>, vector<1x128xf32>
    %42 = vector.broadcast %41 : vector<1x128xf32> to vector<2x128xf32>
    %43 = arith.addf %40, %42 : vector<2x128xf32>
    %cst_45 = arith.constant 0.000000e+00 : f32
    %44 = vector.broadcast %cst_45 : f32 to vector<2x128xf32>
    %45 = arith.maximumf %43, %44 : vector<2x128xf32>
    %c0_46 = arith.constant 0 : index
    %c0_47 = arith.constant 0 : index
    %46 = vector.load %arg15[%c0_46, %c0_47] : memref<128x256xf32, #tpu.memory_space<vmem>>, vector<128x256xf32>
    %cst_48 = arith.constant dense<0.000000e+00> : vector<2x256xf32>
    %47 = tpu.matmul %45, %46, %cst_48 {dimension_numbers = #tpu.dot_dimension_numbers<[1], [0], [0], [1], [0, 0, 1, 1], [], []>} : vector<2x128xf32>, vector<128x256xf32>, vector<2x256xf32> -> vector<2x256xf32>
    %c0_49 = arith.constant 0 : index
    %c0_50 = arith.constant 0 : index
    %48 = vector.load %arg16[%c0_49, %c0_50] : memref<1x256xf32, #tpu.memory_space<vmem>>, vector<1x256xf32>
    %49 = vector.broadcast %48 : vector<1x256xf32> to vector<2x256xf32>
    %50 = arith.addf %47, %49 : vector<2x256xf32>
    %cst_51 = arith.constant 0.000000e+00 : f32
    %51 = vector.broadcast %cst_51 : f32 to vector<2x256xf32>
    %52 = arith.maximumf %50, %51 : vector<2x256xf32>
    %c0_52 = arith.constant 0 : index
    %c0_53 = arith.constant 0 : index
    %53 = vector.load %arg19[%c0_52, %c0_53] : memref<256x128xf32, #tpu.memory_space<vmem>>, vector<256x128xf32>
    %cst_54 = arith.constant dense<0.000000e+00> : vector<2x128xf32>
    %54 = tpu.matmul %52, %53, %cst_54 {dimension_numbers = #tpu.dot_dimension_numbers<[1], [0], [0], [1], [0, 0, 1, 1], [], []>} : vector<2x256xf32>, vector<256x128xf32>, vector<2x128xf32> -> vector<2x128xf32>
    %55 = vector.broadcast %29 : vector<1x128xf32> to vector<2x128xf32>
    %56 = arith.addf %54, %55 : vector<2x128xf32>
    %cst_55 = arith.constant 0.000000e+00 : f32
    %57 = vector.broadcast %cst_55 : f32 to vector<2x128xf32>
    %58 = arith.maximumf %56, %57 : vector<2x128xf32>
    %c0_56 = arith.constant 0 : index
    %c0_57 = arith.constant 0 : index
    %c0_58 = arith.constant 0 : index
    %59 = vector.load %arg20[%c0_56, %c0_57, %c0_58] : memref<1x2x128xf32, #tpu.memory_space<vmem>>, vector<1x2x128xf32>
    %60 = vector.shape_cast %59 : vector<1x2x128xf32> to vector<2x128xf32>
    %61 = vector.shape_cast %58 : vector<2x128xf32> to vector<1x2x128xf32>
    tpu.vector_store %arg20[%c0_56, %c0_57, %c0_58], %61 {strides = array<i32>} : memref<1x2x128xf32, #tpu.memory_space<vmem>>, vector<1x2x128xf32>,
    return
  }
  func.func @transform_0(%arg0: i32) -> (i32, i32, i32) {
    %c0_i32 = arith.constant 0 : i32
    %c0_i32_0 = arith.constant 0 : i32
    %c0_i32_1 = arith.constant 0 : i32
    return %arg0, %c0_i32, %c0_i32_0 : i32, i32, i32
  }
  func.func @transform_1(%arg0: i32) -> (i32, i32, i32) {
    %c0_i32 = arith.constant 0 : i32
    %c0_i32_0 = arith.constant 0 : i32
    %c0_i32_1 = arith.constant 0 : i32
    return %arg0, %c0_i32, %c0_i32_0 : i32, i32, i32
  }
  func.func @transform_2(%arg0: i32) -> (i32, i32, i32) {
    %c0_i32 = arith.constant 0 : i32
    %c0_i32_0 = arith.constant 0 : i32
    %c0_i32_1 = arith.constant 0 : i32
    return %arg0, %c0_i32, %c0_i32_0 : i32, i32, i32
  }
  func.func @transform_3(%arg0: i32) -> (i32, i32) {
    %c0_i32 = arith.constant 0 : i32
    %c0_i32_0 = arith.constant 0 : i32
    %c0_i32_1 = arith.constant 0 : i32
    return %c0_i32, %c0_i32_0 : i32, i32
  }
  func.func @transform_4(%arg0: i32) -> (i32, i32) {
    %c0_i32 = arith.constant 0 : i32
    %c0_i32_0 = arith.constant 0 : i32
    %c0_i32_1 = arith.constant 0 : i32
    return %c0_i32, %c0_i32_0 : i32, i32
  }
  func.func @transform_5(%arg0: i32) -> (i32, i32) {
    %c0_i32 = arith.constant 0 : i32
    %c0_i32_0 = arith.constant 0 : i32
    %c0_i32_1 = arith.constant 0 : i32
    return %c0_i32, %c0_i32_0 : i32, i32
  }
  func.func @transform_6(%arg0: i32) -> (i32, i32) {
    %c0_i32 = arith.constant 0 : i32
    %c0_i32_0 = arith.constant 0 : i32
    %c0_i32_1 = arith.constant 0 : i32
    return %c0_i32, %c0_i32_0 : i32, i32
  }
  func.func @transform_7(%arg0: i32) -> (i32, i32) {
    %c0_i32 = arith.constant 0 : i32
    %c0_i32_0 = arith.constant 0 : i32
    %c0_i32_1 = arith.constant 0 : i32
    return %c0_i32, %c0_i32_0 : i32, i32
  }
  func.func @transform_8(%arg0: i32) -> (i32, i32) {
    %c0_i32 = arith.constant 0 : i32
    %c0_i32_0 = arith.constant 0 : i32
    %c0_i32_1 = arith.constant 0 : i32
    return %c0_i32, %c0_i32_0 : i32, i32
  }
  func.func @transform_9(%arg0: i32) -> (i32, i32) {
    %c0_i32 = arith.constant 0 : i32
    %c0_i32_0 = arith.constant 0 : i32
    %c0_i32_1 = arith.constant 0 : i32
    return %c0_i32, %c0_i32_0 : i32, i32
  }
  func.func @transform_10(%arg0: i32) -> (i32, i32) {
    %c0_i32 = arith.constant 0 : i32
    %c0_i32_0 = arith.constant 0 : i32
    %c0_i32_1 = arith.constant 0 : i32
    return %c0_i32, %c0_i32_0 : i32, i32
  }
  func.func @transform_11(%arg0: i32) -> (i32, i32) {
    %c0_i32 = arith.constant 0 : i32
    %c0_i32_0 = arith.constant 0 : i32
    %c0_i32_1 = arith.constant 0 : i32
    return %c0_i32, %c0_i32_0 : i32, i32
  }
  func.func @transform_12(%arg0: i32) -> (i32, i32) {
    %c0_i32 = arith.constant 0 : i32
    %c0_i32_0 = arith.constant 0 : i32
    %c0_i32_1 = arith.constant 0 : i32
    return %c0_i32, %c0_i32_0 : i32, i32
  }
  func.func @transform_13(%arg0: i32) -> (i32, i32) {
    %c0_i32 = arith.constant 0 : i32
    %c0_i32_0 = arith.constant 0 : i32
    %c0_i32_1 = arith.constant 0 : i32
    return %c0_i32, %c0_i32_0 : i32, i32
  }
  func.func @transform_14(%arg0: i32) -> (i32, i32) {
    %c0_i32 = arith.constant 0 : i32
    %c0_i32_0 = arith.constant 0 : i32
    %c0_i32_1 = arith.constant 0 : i32
    return %c0_i32, %c0_i32_0 : i32, i32
  }
  func.func @transform_15(%arg0: i32) -> (i32, i32) {
    %c0_i32 = arith.constant 0 : i32
    %c0_i32_0 = arith.constant 0 : i32
    %c0_i32_1 = arith.constant 0 : i32
    return %c0_i32, %c0_i32_0 : i32, i32
  }
  func.func @transform_16(%arg0: i32) -> (i32, i32) {
    %c0_i32 = arith.constant 0 : i32
    %c0_i32_0 = arith.constant 0 : i32
    %c0_i32_1 = arith.constant 0 : i32
    return %c0_i32, %c0_i32_0 : i32, i32
  }
  func.func @transform_17(%arg0: i32) -> (i32, i32) {
    %c0_i32 = arith.constant 0 : i32
    %c0_i32_0 = arith.constant 0 : i32
    %c0_i32_1 = arith.constant 0 : i32
    return %c0_i32, %c0_i32_0 : i32, i32
  }
  func.func @transform_18(%arg0: i32) -> (i32, i32) {
    %c0_i32 = arith.constant 0 : i32
    %c0_i32_0 = arith.constant 0 : i32
    %c0_i32_1 = arith.constant 0 : i32
    return %c0_i32, %c0_i32_0 : i32, i32
  }
  func.func @transform_19(%arg0: i32) -> (i32, i32, i32) {
    %c0_i32 = arith.constant 0 : i32
    %c0_i32_0 = arith.constant 0 : i32
    %c0_i32_1 = arith.constant 0 : i32
    return %arg0, %c0_i32, %c0_i32_0 : i32, i32, i32
  }
}

</mosaic_0001>

<llo_original>
// kernel: tpu_custom_call.1
$region0: #{tpu_custom_call.1}
  #allocation0 [shape = 'u32[]', space=smem, size = 0x4, offset = 0x4, fixed_abs, tag = 'smem constant byte address 0x4 - core index']
  #allocation1 [shape = 'u32[72,128]{1,0:T(1,128)}', space=vmem, size = 0x9000, scoped, tag = 'internal scratch']
  %s0 = inlined_call_operand.vmem [shape: f32[4,8,4], index: 0, kind: input, shape index: {}]
  %s1 = inlined_call_operand.vmem [shape: f32[4,8,8], index: 1, kind: input, shape index: {}]
  %s2 = inlined_call_operand.hbm [shape: f32[4,2,6], index: 2, kind: input, shape index: {}]
  %s3 = inlined_call_operand.hbm [shape: f32[1,8], index: 3, kind: input, shape index: {}]
  %s4 = inlined_call_operand.hbm [shape: f32[4,16], index: 4, kind: input, shape index: {}]
  %s5 = inlined_call_operand.hbm [shape: f32[1,16], index: 5, kind: input, shape index: {}]
  %s6 = inlined_call_operand.vmem [shape: f32[16,32], index: 6, kind: input, shape index: {}]
  %s7 = inlined_call_operand.hbm [shape: f32[1,32], index: 7, kind: input, shape index: {}]
  %s8 = inlined_call_operand.hbm [shape: f32[32,32], index: 8, kind: input, shape index: {}]
  %s9 = inlined_call_operand.hbm [shape: f32[1,32], index: 9, kind: input, shape index: {}]
  %s10 = inlined_call_operand.vmem [shape: f32[6,64], index: 10, kind: input, shape index: {}]
  %s11 = inlined_call_operand.hbm [shape: f32[1,64], index: 11, kind: input, shape index: {}]
  %s12 = inlined_call_operand.hbm [shape: f32[64,128], index: 12, kind: input, shape index: {}]
  %s13 = inlined_call_operand.vmem [shape: f32[1,128], index: 13, kind: input, shape index: {}]
  %s14 = inlined_call_operand.hbm [shape: f32[128,256], index: 14, kind: input, shape index: {}]
  %s15 = inlined_call_operand.vmem [shape: f32[1,256], index: 15, kind: input, shape index: {}]
  %s16 = inlined_call_operand.hbm [shape: f32[32,128], index: 16, kind: input, shape index: {}]
  %s17 = inlined_call_operand.vmem [shape: f32[1,128], index: 17, kind: input, shape index: {}]
  %s18 = inlined_call_operand.hbm [shape: f32[256,128], index: 18, kind: input, shape index: {}]
  %s19 = inlined_call_operand.hbm [shape: f32[4,2,128], index: 19, kind: output, shape index: {}]
  %s20 = sld [smem:[#allocation0]]
  $region157: #{tpu_custom_call.1} parent=0
    _
  %s22 = ssub.s32 1, %s20
  %s23 = scalar_select 0, %s22, %s20
  $region1: #{tpu_custom_call.1} parent=0
    #allocation2 [shape = 'u8[2048]{0}', space=vmem, size = 0x800, scoped, tag = 'input window, operand 2']
    #allocation3 [shape = 's32[2]{0}', space=sflag, size = 0x8, scoped, tag = 'scoped memory for tpu_custom_call.1']
    #allocation4 [shape = 's32[2]{0}', space=sflag, size = 0x8, scoped, tag = 'scoped memory for tpu_custom_call.1']
    #allocation5 [shape = 'u8[512]{0}', space=vmem, size = 0x400, scoped, tag = 'input window, operand 3, single buffered']
    #allocation6 [shape = 's32[1]{0}', space=sflag, size = 0x4, scoped, tag = 'scoped memory for tpu_custom_call.1']
    #allocation7 [shape = 'u8[2048]{0}', space=vmem, size = 0x800, scoped, tag = 'input window, operand 4, single buffered']
    #allocation8 [shape = 'u8[512]{0}', space=vmem, size = 0x400, scoped, tag = 'input window, operand 5, single buffered']
    #allocation9 [shape = 's32[1]{0}', space=sflag, size = 0x4, scoped, tag = 'scoped memory for tpu_custom_call.1']
    #allocation10 [shape = 'u8[512]{0}', space=vmem, size = 0x400, scoped, tag = 'input window, operand 7, single buffered']
    #allocation11 [shape = 'u8[16384]{0}', space=vmem, size = 0x4000, scoped, tag = 'input window, operand 8, single buffered']
    #allocation12 [shape = 's32[1]{0}', space=sflag, size = 0x4, scoped, tag = 'scoped memory for tpu_custom_call.1']
    #allocation13 [shape = 'u8[512]{0}', space=vmem, size = 0x400, scoped, tag = 'input window, operand 9, single buffered']
    #allocation14 [shape = 'u8[512]{0}', space=vmem, size = 0x400, scoped, tag = 'input window, operand 11, single buffered']
    #allocation15 [shape = 's32[1]{0}', space=sflag, size = 0x4, scoped, tag = 'scoped memory for tpu_custom_call.1']
    #allocation16 [shape = 'u8[32768]{0}', space=vmem, size = 0x8000, scoped, tag = 'input window, operand 12, single buffered']
    #allocation17 [shape = 'u8[131072]{0}', space=vmem, size = 0x20000, scoped, tag = 'input window, operand 14, single buffered']
    #allocation18 [shape = 's32[1]{0}', space=sflag, size = 0x4, scoped, tag = 'scoped memory for tpu_custom_call.1']
    #allocation19 [shape = 'u8[16384]{0}', space=vmem, size = 0x4000, scoped, tag = 'input window, operand 16, single buffered']
    #allocation20 [shape = 'u8[131072]{0}', space=vmem, size = 0x20000, scoped, tag = 'input window, operand 18, single buffered']
    #allocation21 [shape = 's32[1]{0}', space=sflag, size = 0x4, scoped, tag = 'scoped memory for tpu_custom_call.1']
    #allocation22 [shape = 'u8[2048]{0}', space=vmem, size = 0x800, scoped, tag = 'output window, operand 0']
    %24 = vsyncpa [#allocation3], 0
    %s25 = scalar_lea.sflag [#allocation3], 1
    %26 = vsyncpa %s25, 0
    %27 = vsyncpa [#allocation6], 0
    %28 = vsyncpa [#allocation9], 0
    %29 = vsyncpa [#allocation12], 0
    %30 = vsyncpa [#allocation15], 0
    %31 = vsyncpa [#allocation18], 0
    %32 = vsyncpa [#allocation21], 0
    %33 = vsyncpa [#allocation4], 0
    %s34 = scalar_lea.sflag [#allocation4], 1
    %35 = vsyncpa %s34, 0
    loop: start=0, step=1, limit=6
    $region2: #{tpu_custom_call.1} parent=1 // loop_pre_header
      _
    $region3: #{tpu_custom_call.1} parent=1 // loop_header
      %s37 = sphi 0, %s41
      %p38 = scmp.ge.s32.totalorder %s37, 6
      %s47 = sphi 0, %s49
      %s50 = sphi 0, %s47
      %s51 = sphi 0, %s50
      %s67 = sphi 0, %s51
      %s73 = sphi 0, %s75
      %s76 = sphi 0, %s73
      %s77 = sphi 0, %s76
      %s93 = sphi 0, %s77
      %s99 = sphi 0, %s101
      %s102 = sphi 0, %s99
      %s103 = sphi 0, %s102
      %s119 = sphi 0, %s103
      %s123 = sphi 0, %s123
      %s125 = sphi 0, %s123
      %s126 = sphi 0, %s125
      %s140 = sphi 0, %s126
      %s144 = sphi 0, %s144
      %s146 = sphi 0, %s144
      %s147 = sphi 0, %s146
      %s161 = sphi 0, %s147
      %s165 = sphi 0, %s165
      %s167 = sphi 0, %s165
      %s168 = sphi 0, %s167
      %s182 = sphi 0, %s168
      %s186 = sphi 0, %s186
      %s188 = sphi 0, %s186
      %s189 = sphi 0, %s188
      %s203 = sphi 0, %s189
      %s207 = sphi 0, %s207
      %s209 = sphi 0, %s207
      %s210 = sphi 0, %s209
      %s224 = sphi 0, %s210
      %s228 = sphi 0, %s228
      %s230 = sphi 0, %s228
      %s231 = sphi 0, %s230
      %s245 = sphi 0, %s231
      %s249 = sphi 0, %s249
      %s251 = sphi 0, %s249
      %s252 = sphi 0, %s251
      %s266 = sphi 0, %s252
      %s270 = sphi 0, %s270
      %s272 = sphi 0, %s270
      %s273 = sphi 0, %s272
      %s287 = sphi 0, %s273
      %s291 = sphi 0, %s291
      %s293 = sphi 0, %s291
      %s294 = sphi 0, %s293
      %s308 = sphi 0, %s294
      %s312 = sphi 0, %s312
      %s314 = sphi 0, %s312
      %s315 = sphi 0, %s314
      %s329 = sphi 0, %s315
      %s333 = sphi 0, %s333
      %s335 = sphi 0, %s333
      %s336 = sphi 0, %s335
      %s350 = sphi 0, %s336
      %s354 = sphi 0, %s354
      %s356 = sphi 0, %s354
      %s357 = sphi 0, %s356
      %s371 = sphi 0, %s357
      %s375 = sphi 0, %s375
      %s377 = sphi 0, %s375
      %s378 = sphi 0, %s377
      %s392 = sphi 0, %s378
      %s396 = sphi 0, %s396
      %s398 = sphi 0, %s396
      %s399 = sphi 0, %s398
      %s413 = sphi 0, %s399
      %s417 = sphi 0, %s417
      %s419 = sphi 0, %s417
      %s420 = sphi 0, %s419
      %s434 = sphi 0, %s420
      %s438 = sphi 0, %s438
      %s440 = sphi 0, %s438
      %s441 = sphi 0, %s440
      %s455 = sphi 0, %s441
      %s461 = sphi 0, %s463
      %s464 = sphi 0, %s461
      %s465 = sphi 0, %s464
      %s481 = sphi 0, %s465
    $region4: #{tpu_custom_call.1} parent=1 // loop_header_branch
      %40 = sbr.rel (%p38) target = $region8
    $region5: #{tpu_custom_call.1} parent=1 // loop_body
      %s42 = ssub.s32 %s37, 1
      %s43 = ssub.s32 %s37, 2
      %s44 = sadd.s32 %s37, 1
      %s45 = ssub.s32 %s37, %s44
      %p46 = scmp.eq.s32.totalorder %s45, 0
      %s48 = sadd.s32 %s47, 1
      %s49 = scalar_select %p46, %s47, %s48
      %p52 = pneg %p46
      %p53 = scmp.eq.s32.totalorder %s37, 3
      %p54 = por %p52, %p53
      %p55 = scmp.ne.s32.totalorder %s47, %s50
      %p56 = scmp.eq.s32.totalorder %s37, 0
      %p57 = por %p55, %p56
      %p58 = scmp.ne.s32.totalorder %s47, %s50
      %p59 = scmp.eq.s32.totalorder %s42, 3
      %p60 = por %p58, %p59
      %p61 = scmp.ne.s32.totalorder %s50, %s51
      %p62 = scmp.eq.s32.totalorder %s42, 0
      %p63 = por %p61, %p62
      %p64 = scmp.ne.s32.totalorder %s50, %s51
      %p65 = scmp.eq.s32.totalorder %s43, 3
      %p66 = por %p64, %p65
      %p68 = scmp.ne.s32.totalorder %s51, %s67
      %p69 = scmp.eq.s32.totalorder %s43, 0
      %p70 = por %p68, %p69
      %s71 = ssub.s32 %s37, %s44
      %p72 = scmp.eq.s32.totalorder %s71, 0
      %s74 = sadd.s32 %s73, 1
      %s75 = scalar_select %p72, %s73, %s74
      %p78 = pneg %p72
      %p79 = scmp.eq.s32.totalorder %s37, 3
      %p80 = por %p78, %p79
      %p81 = scmp.ne.s32.totalorder %s73, %s76
      %p82 = scmp.eq.s32.totalorder %s37, 0
      %p83 = por %p81, %p82
      %p84 = scmp.ne.s32.totalorder %s73, %s76
      %p85 = scmp.eq.s32.totalorder %s42, 3
      %p86 = por %p84, %p85
      %p87 = scmp.ne.s32.totalorder %s76, %s77
      %p88 = scmp.eq.s32.totalorder %s42, 0
      %p89 = por %p87, %p88
      %p90 = scmp.ne.s32.totalorder %s76, %s77
      %p91 = scmp.eq.s32.totalorder %s43, 3
      %p92 = por %p90, %p91
      %p94 = scmp.ne.s32.totalorder %s77, %s93
      %p95 = scmp.eq.s32.totalorder %s43, 0
      %p96 = por %p94, %p95
      %s97 = ssub.s32 %s37, %s44
      %p98 = scmp.eq.s32.totalorder %s97, 0
      %s100 = sadd.s32 %s99, 1
      %s101 = scalar_select %p98, %s99, %s100
      %p104 = pneg %p98
      %p105 = scmp.eq.s32.totalorder %s37, 3
      %p106 = por %p104, %p105
      %p107 = scmp.ne.s32.totalorder %s99, %s102
      %p108 = scmp.eq.s32.totalorder %s37, 0
      %p109 = por %p107, %p108
      %p110 = scmp.ne.s32.totalorder %s99, %s102
      %p111 = scmp.eq.s32.totalorder %s42, 3
      %p112 = por %p110, %p111
      %p113 = scmp.ne.s32.totalorder %s102, %s103
      %p114 = scmp.eq.s32.totalorder %s42, 0
      %p115 = por %p113, %p114
      %p116 = scmp.ne.s32.totalorder %s102, %s103
      %p117 = scmp.eq.s32.totalorder %s43, 3
      %p118 = por %p116, %p117
      %p120 = scmp.ne.s32.totalorder %s103, %s119
      %p121 = scmp.eq.s32.totalorder %s43, 0
      %p122 = por %p120, %p121
      %s124 = sadd.s32 %s123, 1
      %p127 = scmp.eq.s32.totalorder %s37, 3
      %p128 = scmp.ne.s32.totalorder %s123, %s125
      %p129 = scmp.eq.s32.totalorder %s37, 0
      %p130 = por %p128, %p129
      %p131 = scmp.ne.s32.totalorder %s123, %s125
      %p132 = scmp.eq.s32.totalorder %s42, 3
      %p133 = por %p131, %p132
      %p134 = scmp.ne.s32.totalorder %s125, %s126
      %p135 = scmp.eq.s32.totalorder %s42, 0
      %p136 = por %p134, %p135
      %p137 = scmp.ne.s32.totalorder %s125, %s126
      %p138 = scmp.eq.s32.totalorder %s43, 3
      %p139 = por %p137, %p138
      %p141 = scmp.ne.s32.totalorder %s126, %s140
      %p142 = scmp.eq.s32.totalorder %s43, 0
      %p143 = por %p141, %p142
      %s145 = sadd.s32 %s144, 1
      %p148 = scmp.eq.s32.totalorder %s37, 3
      %p149 = scmp.ne.s32.totalorder %s144, %s146
      %p150 = scmp.eq.s32.totalorder %s37, 0
      %p151 = por %p149, %p150
      %p152 = scmp.ne.s32.totalorder %s144, %s146
      %p153 = scmp.eq.s32.totalorder %s42, 3
      %p154 = por %p152, %p153
      %p155 = scmp.ne.s32.totalorder %s146, %s147
      %p156 = scmp.eq.s32.totalorder %s42, 0
      %p157 = por %p155, %p156
      %p158 = scmp.ne.s32.totalorder %s146, %s147
      %p159 = scmp.eq.s32.totalorder %s43, 3
      %p160 = por %p158, %p159
      %p162 = scmp.ne.s32.totalorder %s147, %s161
      %p163 = scmp.eq.s32.totalorder %s43, 0
      %p164 = por %p162, %p163
      %s166 = sadd.s32 %s165, 1
      %p169 = scmp.eq.s32.totalorder %s37, 3
      %p170 = scmp.ne.s32.totalorder %s165, %s167
      %p171 = scmp.eq.s32.totalorder %s37, 0
      %p172 = por %p170, %p171
      %p173 = scmp.ne.s32.totalorder %s165, %s167
      %p174 = scmp.eq.s32.totalorder %s42, 3
      %p175 = por %p173, %p174
      %p176 = scmp.ne.s32.totalorder %s167, %s168
      %p177 = scmp.eq.s32.totalorder %s42, 0
      %p178 = por %p176, %p177
      %p179 = scmp.ne.s32.totalorder %s167, %s168
      %p180 = scmp.eq.s32.totalorder %s43, 3
      %p181 = por %p179, %p180
      %p183 = scmp.ne.s32.totalorder %s168, %s182
      %p184 = scmp.eq.s32.totalorder %s43, 0
      %p185 = por %p183, %p184
      %s187 = sadd.s32 %s186, 1
      %p190 = scmp.eq.s32.totalorder %s37, 3
      %p191 = scmp.ne.s32.totalorder %s186, %s188
      %p192 = scmp.eq.s32.totalorder %s37, 0
      %p193 = por %p191, %p192
      %p194 = scmp.ne.s32.totalorder %s186, %s188
      %p195 = scmp.eq.s32.totalorder %s42, 3
      %p196 = por %p194, %p195
      %p197 = scmp.ne.s32.totalorder %s188, %s189
      %p198 = scmp.eq.s32.totalorder %s42, 0
      %p199 = por %p197, %p198
      %p200 = scmp.ne.s32.totalorder %s188, %s189
      %p201 = scmp.eq.s32.totalorder %s43, 3
      %p202 = por %p200, %p201
      %p204 = scmp.ne.s32.totalorder %s189, %s203
      %p205 = scmp.eq.s32.totalorder %s43, 0
      %p206 = por %p204, %p205
      %s208 = sadd.s32 %s207, 1
      %p211 = scmp.eq.s32.totalorder %s37, 3
      %p212 = scmp.ne.s32.totalorder %s207, %s209
      %p213 = scmp.eq.s32.totalorder %s37, 0
      %p214 = por %p212, %p213
      %p215 = scmp.ne.s32.totalorder %s207, %s209
      %p216 = scmp.eq.s32.totalorder %s42, 3
      %p217 = por %p215, %p216
      %p218 = scmp.ne.s32.totalorder %s209, %s210
      %p219 = scmp.eq.s32.totalorder %s42, 0
      %p220 = por %p218, %p219
      %p221 = scmp.ne.s32.totalorder %s209, %s210
      %p222 = scmp.eq.s32.totalorder %s43, 3
      %p223 = por %p221, %p222
      %p225 = scmp.ne.s32.totalorder %s210, %s224
      %p226 = scmp.eq.s32.totalorder %s43, 0
      %p227 = por %p225, %p226
      %s229 = sadd.s32 %s228, 1
      %p232 = scmp.eq.s32.totalorder %s37, 3
      %p233 = scmp.ne.s32.totalorder %s228, %s230
      %p234 = scmp.eq.s32.totalorder %s37, 0
      %p235 = por %p233, %p234
      %p236 = scmp.ne.s32.totalorder %s228, %s230
      %p237 = scmp.eq.s32.totalorder %s42, 3
      %p238 = por %p236, %p237
      %p239 = scmp.ne.s32.totalorder %s230, %s231
      %p240 = scmp.eq.s32.totalorder %s42, 0
      %p241 = por %p239, %p240
      %p242 = scmp.ne.s32.totalorder %s230, %s231
      %p243 = scmp.eq.s32.totalorder %s43, 3
      %p244 = por %p242, %p243
      %p246 = scmp.ne.s32.totalorder %s231, %s245
      %p247 = scmp.eq.s32.totalorder %s43, 0
      %p248 = por %p246, %p247
      %s250 = sadd.s32 %s249, 1
      %p253 = scmp.eq.s32.totalorder %s37, 3
      %p254 = scmp.ne.s32.totalorder %s249, %s251
      %p255 = scmp.eq.s32.totalorder %s37, 0
      %p256 = por %p254, %p255
      %p257 = scmp.ne.s32.totalorder %s249, %s251
      %p258 = scmp.eq.s32.totalorder %s42, 3
      %p259 = por %p257, %p258
      %p260 = scmp.ne.s32.totalorder %s251, %s252
      %p261 = scmp.eq.s32.totalorder %s42, 0
      %p262 = por %p260, %p261
      %p263 = scmp.ne.s32.totalorder %s251, %s252
      %p264 = scmp.eq.s32.totalorder %s43, 3
      %p265 = por %p263, %p264
      %p267 = scmp.ne.s32.totalorder %s252, %s266
      %p268 = scmp.eq.s32.totalorder %s43, 0
      %p269 = por %p267, %p268
      %s271 = sadd.s32 %s270, 1
      %p274 = scmp.eq.s32.totalorder %s37, 3
      %p275 = scmp.ne.s32.totalorder %s270, %s272
      %p276 = scmp.eq.s32.totalorder %s37, 0
      %p277 = por %p275, %p276
      %p278 = scmp.ne.s32.totalorder %s270, %s272
      %p279 = scmp.eq.s32.totalorder %s42, 3
      %p280 = por %p278, %p279
      %p281 = scmp.ne.s32.totalorder %s272, %s273
      %p282 = scmp.eq.s32.totalorder %s42, 0
      %p283 = por %p281, %p282
      %p284 = scmp.ne.s32.totalorder %s272, %s273
      %p285 = scmp.eq.s32.totalorder %s43, 3
      %p286 = por %p284, %p285
      %p288 = scmp.ne.s32.totalorder %s273, %s287
      %p289 = scmp.eq.s32.totalorder %s43, 0
      %p290 = por %p288, %p289
      %s292 = sadd.s32 %s291, 1
      %p295 = scmp.eq.s32.totalorder %s37, 3
      %p296 = scmp.ne.s32.totalorder %s291, %s293
      %p297 = scmp.eq.s32.totalorder %s37, 0
      %p298 = por %p296, %p297
      %p299 = scmp.ne.s32.totalorder %s291, %s293
      %p300 = scmp.eq.s32.totalorder %s42, 3
      %p301 = por %p299, %p300
      %p302 = scmp.ne.s32.totalorder %s293, %s294
      %p303 = scmp.eq.s32.totalorder %s42, 0
      %p304 = por %p302, %p303
      %p305 = scmp.ne.s32.totalorder %s293, %s294
      %p306 = scmp.eq.s32.totalorder %s43, 3
      %p307 = por %p305, %p306
      %p309 = scmp.ne.s32.totalorder %s294, %s308
      %p310 = scmp.eq.s32.totalorder %s43, 0
      %p311 = por %p309, %p310
      %s313 = sadd.s32 %s312, 1
      %p316 = scmp.eq.s32.totalorder %s37, 3
      %p317 = scmp.ne.s32.totalorder %s312, %s314
      %p318 = scmp.eq.s32.totalorder %s37, 0
      %p319 = por %p317, %p318
      %p320 = scmp.ne.s32.totalorder %s312, %s314
      %p321 = scmp.eq.s32.totalorder %s42, 3
      %p322 = por %p320, %p321
      %p323 = scmp.ne.s32.totalorder %s314, %s315
      %p324 = scmp.eq.s32.totalorder %s42, 0
      %p325 = por %p323, %p324
      %p326 = scmp.ne.s32.totalorder %s314, %s315
      %p327 = scmp.eq.s32.totalorder %s43, 3
      %p328 = por %p326, %p327
      %p330 = scmp.ne.s32.totalorder %s315, %s329
      %p331 = scmp.eq.s32.totalorder %s43, 0
      %p332 = por %p330, %p331
      %s334 = sadd.s32 %s333, 1
      %p337 = scmp.eq.s32.totalorder %s37, 3
      %p338 = scmp.ne.s32.totalorder %s333, %s335
      %p339 = scmp.eq.s32.totalorder %s37, 0
      %p340 = por %p338, %p339
      %p341 = scmp.ne.s32.totalorder %s333, %s335
      %p342 = scmp.eq.s32.totalorder %s42, 3
      %p343 = por %p341, %p342
      %p344 = scmp.ne.s32.totalorder %s335, %s336
      %p345 = scmp.eq.s32.totalorder %s42, 0
      %p346 = por %p344, %p345
      %p347 = scmp.ne.s32.totalorder %s335, %s336
      %p348 = scmp.eq.s32.totalorder %s43, 3
      %p349 = por %p347, %p348
      %p351 = scmp.ne.s32.totalorder %s336, %s350
      %p352 = scmp.eq.s32.totalorder %s43, 0
      %p353 = por %p351, %p352
      %s355 = sadd.s32 %s354, 1
      %p358 = scmp.eq.s32.totalorder %s37, 3
      %p359 = scmp.ne.s32.totalorder %s354, %s356
      %p360 = scmp.eq.s32.totalorder %s37, 0
      %p361 = por %p359, %p360
      %p362 = scmp.ne.s32.totalorder %s354, %s356
      %p363 = scmp.eq.s32.totalorder %s42, 3
      %p364 = por %p362, %p363
      %p365 = scmp.ne.s32.totalorder %s356, %s357
      %p366 = scmp.eq.s32.totalorder %s42, 0
      %p367 = por %p365, %p366
      %p368 = scmp.ne.s32.totalorder %s356, %s357
      %p369 = scmp.eq.s32.totalorder %s43, 3
      %p370 = por %p368, %p369
      %p372 = scmp.ne.s32.totalorder %s357, %s371
      %p373 = scmp.eq.s32.totalorder %s43, 0
      %p374 = por %p372, %p373
      %s376 = sadd.s32 %s375, 1
      %p379 = scmp.eq.s32.totalorder %s37, 3
      %p380 = scmp.ne.s32.totalorder %s375, %s377
      %p381 = scmp.eq.s32.totalorder %s37, 0
      %p382 = por %p380, %p381
      %p383 = scmp.ne.s32.totalorder %s375, %s377
      %p384 = scmp.eq.s32.totalorder %s42, 3
      %p385 = por %p383, %p384
      %p386 = scmp.ne.s32.totalorder %s377, %s378
      %p387 = scmp.eq.s32.totalorder %s42, 0
      %p388 = por %p386, %p387
      %p389 = scmp.ne.s32.totalorder %s377, %s378
      %p390 = scmp.eq.s32.totalorder %s43, 3
      %p391 = por %p389, %p390
      %p393 = scmp.ne.s32.totalorder %s378, %s392
      %p394 = scmp.eq.s32.totalorder %s43, 0
      %p395 = por %p393, %p394
      %s397 = sadd.s32 %s396, 1
      %p400 = scmp.eq.s32.totalorder %s37, 3
      %p401 = scmp.ne.s32.totalorder %s396, %s398
      %p402 = scmp.eq.s32.totalorder %s37, 0
      %p403 = por %p401, %p402
      %p404 = scmp.ne.s32.totalorder %s396, %s398
      %p405 = scmp.eq.s32.totalorder %s42, 3
      %p406 = por %p404, %p405
      %p407 = scmp.ne.s32.totalorder %s398, %s399
      %p408 = scmp.eq.s32.totalorder %s42, 0
      %p409 = por %p407, %p408
      %p410 = scmp.ne.s32.totalorder %s398, %s399
      %p411 = scmp.eq.s32.totalorder %s43, 3
      %p412 = por %p410, %p411
      %p414 = scmp.ne.s32.totalorder %s399, %s413
      %p415 = scmp.eq.s32.totalorder %s43, 0
      %p416 = por %p414, %p415
      %s418 = sadd.s32 %s417, 1
      %p421 = scmp.eq.s32.totalorder %s37, 3
      %p422 = scmp.ne.s32.totalorder %s417, %s419
      %p423 = scmp.eq.s32.totalorder %s37, 0
      %p424 = por %p422, %p423
      %p425 = scmp.ne.s32.totalorder %s417, %s419
      %p426 = scmp.eq.s32.totalorder %s42, 3
      %p427 = por %p425, %p426
      %p428 = scmp.ne.s32.totalorder %s419, %s420
      %p429 = scmp.eq.s32.totalorder %s42, 0
      %p430 = por %p428, %p429
      %p431 = scmp.ne.s32.totalorder %s419, %s420
      %p432 = scmp.eq.s32.totalorder %s43, 3
      %p433 = por %p431, %p432
      %p435 = scmp.ne.s32.totalorder %s420, %s434
      %p436 = scmp.eq.s32.totalorder %s43, 0
      %p437 = por %p435, %p436
      %s439 = sadd.s32 %s438, 1
      %p442 = scmp.eq.s32.totalorder %s37, 3
      %p443 = scmp.ne.s32.totalorder %s438, %s440
      %p444 = scmp.eq.s32.totalorder %s37, 0
      %p445 = por %p443, %p444
      %p446 = scmp.ne.s32.totalorder %s438, %s440
      %p447 = scmp.eq.s32.totalorder %s42, 3
      %p448 = por %p446, %p447
      %p449 = scmp.ne.s32.totalorder %s440, %s441
      %p450 = scmp.eq.s32.totalorder %s42, 0
      %p451 = por %p449, %p450
      %p452 = scmp.ne.s32.totalorder %s440, %s441
      %p453 = scmp.eq.s32.totalorder %s43, 3
      %p454 = por %p452, %p453
      %p456 = scmp.ne.s32.totalorder %s441, %s455
      %p457 = scmp.eq.s32.totalorder %s43, 0
      %p458 = por %p456, %p457
      %s459 = ssub.s32 %s37, %s44
      %p460 = scmp.eq.s32.totalorder %s459, 0
      %s462 = sadd.s32 %s461, 1
      %s463 = scalar_select %p460, %s461, %s462
      %p466 = pneg %p460
      %p467 = scmp.eq.s32.totalorder %s37, 3
      %p468 = por %p466, %p467
      %p469 = scmp.ne.s32.totalorder %s461, %s464
      %p470 = scmp.eq.s32.totalorder %s37, 0
      %p471 = por %p469, %p470
      %p472 = scmp.ne.s32.totalorder %s461, %s464
      %p473 = scmp.eq.s32.totalorder %s42, 3
      %p474 = por %p472, %p473
      %p475 = scmp.ne.s32.totalorder %s464, %s465
      %p476 = scmp.eq.s32.totalorder %s42, 0
      %p477 = por %p475, %p476
      %p478 = scmp.ne.s32.totalorder %s464, %s465
      %p479 = scmp.eq.s32.totalorder %s43, 3
      %p480 = por %p478, %p479
      %p482 = scmp.ne.s32.totalorder %s465, %s481
      %p483 = scmp.eq.s32.totalorder %s43, 0
      %p484 = por %p482, %p483
      %p485 = scmp.le.s32.totalorder 1, %s37
      %p486 = scmp.lt.s32.totalorder %s37, 5
      %p487 = pnand %p485, %p486
      %p488 = pneg %p487
      // Predicated region
      $region9: #{tpu_custom_call.1} parent=5 // pred_check
        _
      $region10: #{tpu_custom_call.1} parent=5 // pred_check_branch
        %490 = sbr.rel (%p487) target = $region12
      $region11: #{tpu_custom_call.1} parent=5 // pred_region
        %s491 = ssub.s32 %s37, 1
        // Predicated region
        $region13: #{tpu_custom_call.1} parent=11 // pred_check
          %p492 = pneg %p136
        $region14: #{tpu_custom_call.1} parent=11 // pred_check_branch
          %494 = sbr.rel (%p492) target = $region16
        $region15: #{tpu_custom_call.1} parent=11 // pred_region
          %496 = vsyncadd [#allocation6], 0
          %s498 = sshll.u32 %s3, 4
          %s499 = int_to_ptr.hbm [resolvable:$true] %s498
          %s500 = sshll.u32 [#allocation5], 4
          %s501 = int_to_ptr.vmem [resolvable:$true] %s500
          %503 = dma.hbm_to_vmem [thread:$0]  %s499, 16, %s501, [#allocation6]
        $region16: #{tpu_custom_call.1} parent=11 // pred_fallthru
          _
        // Predicated region
        $region17: #{tpu_custom_call.1} parent=11 // pred_check
          %p504 = pneg %p157
        $region18: #{tpu_custom_call.1} parent=11 // pred_check_branch
          %506 = sbr.rel (%p504) target = $region20
        $region19: #{tpu_custom_call.1} parent=11 // pred_region
          %508 = vsyncadd [#allocation6], 0
          %s510 = sshll.u32 %s4, 4
          %s511 = int_to_ptr.hbm [resolvable:$true] %s510
          %s512 = sshll.u32 [#allocation7], 4
          %s513 = int_to_ptr.vmem [resolvable:$true] %s512
          %515 = dma.hbm_to_vmem [thread:$0]  %s511, 64, %s513, [#allocation6]
        $region20: #{tpu_custom_call.1} parent=11 // pred_fallthru
          _
        // Predicated region
        $region21: #{tpu_custom_call.1} parent=11 // pred_check
          %p516 = pneg %p178
        $region22: #{tpu_custom_call.1} parent=11 // pred_check_branch
          %518 = sbr.rel (%p516) target = $region24
        $region23: #{tpu_custom_call.1} parent=11 // pred_region
          %520 = vsyncadd [#allocation9], 0
          %s522 = sshll.u32 %s5, 4
          %s523 = int_to_ptr.hbm [resolvable:$true] %s522
          %s524 = sshll.u32 [#allocation8], 4
          %s525 = int_to_ptr.vmem [resolvable:$true] %s524
          %527 = dma.hbm_to_vmem [thread:$0]  %s523, 16, %s525, [#allocation9]
        $region24: #{tpu_custom_call.1} parent=11 // pred_fallthru
          _
        // Predicated region
        $region25: #{tpu_custom_call.1} parent=11 // pred_check
          %p528 = pneg %p199
        $region26: #{tpu_custom_call.1} parent=11 // pred_check_branch
          %530 = sbr.rel (%p528) target = $region28
        $region27: #{tpu_custom_call.1} parent=11 // pred_region
          _
        $region28: #{tpu_custom_call.1} parent=11 // pred_fallthru
          _
        // Predicated region
        $region29: #{tpu_custom_call.1} parent=11 // pred_check
          %p531 = pneg %p220
        $region30: #{tpu_custom_call.1} parent=11 // pred_check_branch
          %533 = sbr.rel (%p531) target = $region32
        $region31: #{tpu_custom_call.1} parent=11 // pred_region
          %535 = vsyncadd [#allocation9], 0
          %s537 = sshll.u32 %s7, 4
          %s538 = int_to_ptr.hbm [resolvable:$true] %s537
          %s539 = sshll.u32 [#allocation10], 4
          %s540 = int_to_ptr.vmem [resolvable:$true] %s539
          %542 = dma.hbm_to_vmem [thread:$0]  %s538, 16, %s540, [#allocation9]
        $region32: #{tpu_custom_call.1} parent=11 // pred_fallthru
          _
        // Predicated region
        $region33: #{tpu_custom_call.1} parent=11 // pred_check
          %p543 = pneg %p241
        $region34: #{tpu_custom_call.1} parent=11 // pred_check_branch
          %545 = sbr.rel (%p543) target = $region36
        $region35: #{tpu_custom_call.1} parent=11 // pred_region
          %547 = vsyncadd [#allocation12], 0
          %s548 = sshll.u32 %s8, 4
          %s549 = int_to_ptr.hbm [resolvable:$true] %s548
          %s550 = sshll.u32 [#allocation11], 4
          %s551 = int_to_ptr.vmem [resolvable:$true] %s550
          %556 = dma.hbm_to_vmem [thread:$0]  %s549, 512, %s551, [#allocation12], 128, 128, 8
        $region36: #{tpu_custom_call.1} parent=11 // pred_fallthru
          _
        // Predicated region
        $region37: #{tpu_custom_call.1} parent=11 // pred_check
          %p557 = pneg %p262
        $region38: #{tpu_custom_call.1} parent=11 // pred_check_branch
          %559 = sbr.rel (%p557) target = $region40
        $region39: #{tpu_custom_call.1} parent=11 // pred_region
          %561 = vsyncadd [#allocation12], 0
          %s563 = sshll.u32 %s9, 4
          %s564 = int_to_ptr.hbm [resolvable:$true] %s563
          %s565 = sshll.u32 [#allocation13], 4
          %s566 = int_to_ptr.vmem [resolvable:$true] %s565
          %568 = dma.hbm_to_vmem [thread:$0]  %s564, 16, %s566, [#allocation12]
        $region40: #{tpu_custom_call.1} parent=11 // pred_fallthru
          _
        // Predicated region
        $region41: #{tpu_custom_call.1} parent=11 // pred_check
          %p569 = pneg %p283
        $region42: #{tpu_custom_call.1} parent=11 // pred_check_branch
          %571 = sbr.rel (%p569) target = $region44
        $region43: #{tpu_custom_call.1} parent=11 // pred_region
          _
        $region44: #{tpu_custom_call.1} parent=11 // pred_fallthru
          _
        // Predicated region
        $region45: #{tpu_custom_call.1} parent=11 // pred_check
          %p572 = pneg %p304
        $region46: #{tpu_custom_call.1} parent=11 // pred_check_branch
          %574 = sbr.rel (%p572) target = $region48
        $region47: #{tpu_custom_call.1} parent=11 // pred_region
          %576 = vsyncadd [#allocation15], 0
          %s578 = sshll.u32 %s11, 4
          %s579 = int_to_ptr.hbm [resolvable:$true] %s578
          %s580 = sshll.u32 [#allocation14], 4
          %s581 = int_to_ptr.vmem [resolvable:$true] %s580
          %583 = dma.hbm_to_vmem [thread:$0]  %s579, 16, %s581, [#allocation15]
        $region48: #{tpu_custom_call.1} parent=11 // pred_fallthru
          _
        // Predicated region
        $region49: #{tpu_custom_call.1} parent=11 // pred_check
          %p584 = pneg %p325
        $region50: #{tpu_custom_call.1} parent=11 // pred_check_branch
          %586 = sbr.rel (%p584) target = $region52
        $region51: #{tpu_custom_call.1} parent=11 // pred_region
          %588 = vsyncadd [#allocation15], 0
          %s589 = sshll.u32 %s12, 4
          %s590 = int_to_ptr.hbm [resolvable:$true] %s589
          %s591 = sshll.u32 [#allocation16], 4
          %s592 = int_to_ptr.vmem [resolvable:$true] %s591
          %597 = dma.hbm_to_vmem [thread:$0]  %s590, 1024, %s592, [#allocation15], 128, 128, 8
        $region52: #{tpu_custom_call.1} parent=11 // pred_fallthru
          _
        // Predicated region
        $region53: #{tpu_custom_call.1} parent=11 // pred_check
          %p598 = pneg %p346
        $region54: #{tpu_custom_call.1} parent=11 // pred_check_branch
          %600 = sbr.rel (%p598) target = $region56
        $region55: #{tpu_custom_call.1} parent=11 // pred_region
          _
        $region56: #{tpu_custom_call.1} parent=11 // pred_fallthru
          _
        // Predicated region
        $region57: #{tpu_custom_call.1} parent=11 // pred_check
          %p601 = pneg %p367
        $region58: #{tpu_custom_call.1} parent=11 // pred_check_branch
          %603 = sbr.rel (%p601) target = $region60
        $region59: #{tpu_custom_call.1} parent=11 // pred_region
          %605 = vsyncadd [#allocation18], 0
          %s606 = sshll.u32 %s14, 4
          %s607 = int_to_ptr.hbm [resolvable:$true] %s606
          %s608 = sshll.u32 [#allocation17], 4
          %s609 = int_to_ptr.vmem [resolvable:$true] %s608
          %614 = dma.hbm_to_vmem [thread:$0]  %s607, 4096, %s609, [#allocation18], 256, 256, 16
        $region60: #{tpu_custom_call.1} parent=11 // pred_fallthru
          _
        // Predicated region
        $region61: #{tpu_custom_call.1} parent=11 // pred_check
          %p615 = pneg %p388
        $region62: #{tpu_custom_call.1} parent=11 // pred_check_branch
          %617 = sbr.rel (%p615) target = $region64
        $region63: #{tpu_custom_call.1} parent=11 // pred_region
          _
        $region64: #{tpu_custom_call.1} parent=11 // pred_fallthru
          _
        // Predicated region
        $region65: #{tpu_custom_call.1} parent=11 // pred_check
          %p618 = pneg %p409
        $region66: #{tpu_custom_call.1} parent=11 // pred_check_branch
          %620 = sbr.rel (%p618) target = $region68
        $region67: #{tpu_custom_call.1} parent=11 // pred_region
          %622 = vsyncadd [#allocation18], 0
          %s623 = sshll.u32 %s16, 4
          %s624 = int_to_ptr.hbm [resolvable:$true] %s623
          %s625 = sshll.u32 [#allocation19], 4
          %s626 = int_to_ptr.vmem [resolvable:$true] %s625
          %631 = dma.hbm_to_vmem [thread:$0]  %s624, 512, %s626, [#allocation18], 128, 128, 8
        $region68: #{tpu_custom_call.1} parent=11 // pred_fallthru
          _
        // Predicated region
        $region69: #{tpu_custom_call.1} parent=11 // pred_check
          %p632 = pneg %p430
        $region70: #{tpu_custom_call.1} parent=11 // pred_check_branch
          %634 = sbr.rel (%p632) target = $region72
        $region71: #{tpu_custom_call.1} parent=11 // pred_region
          _
        $region72: #{tpu_custom_call.1} parent=11 // pred_fallthru
          _
        // Predicated region
        $region73: #{tpu_custom_call.1} parent=11 // pred_check
          %p635 = pneg %p451
        $region74: #{tpu_custom_call.1} parent=11 // pred_check_branch
          %637 = sbr.rel (%p635) target = $region76
        $region75: #{tpu_custom_call.1} parent=11 // pred_region
          %639 = vsyncadd [#allocation21], 0
          %s640 = sshll.u32 %s18, 4
          %s641 = int_to_ptr.hbm [resolvable:$true] %s640
          %s642 = sshll.u32 [#allocation20], 4
          %s643 = int_to_ptr.vmem [resolvable:$true] %s642
          %648 = dma.hbm_to_vmem [thread:$0]  %s641, 4096, %s643, [#allocation21], 128, 128, 8
        $region76: #{tpu_custom_call.1} parent=11 // pred_fallthru
          _
      $region12: #{tpu_custom_call.1} parent=5 // pred_fallthru
        _
      %p649 = scmp.lt.s32.totalorder %s37, 4
      // Predicated region
      $region77: #{tpu_custom_call.1} parent=5 // pred_check
        %p650 = pneg %p649
      $region78: #{tpu_custom_call.1} parent=5 // pred_check_branch
        %652 = sbr.rel (%p650) target = $region80
      $region79: #{tpu_custom_call.1} parent=5 // pred_region
        // Predicated region
        $region81: #{tpu_custom_call.1} parent=79 // pred_check
          %p653 = pneg %p57
        $region82: #{tpu_custom_call.1} parent=79 // pred_check_branch
          %655 = sbr.rel (%p653) target = $region84
        $region83: #{tpu_custom_call.1} parent=79 // pred_region
          %p656 = scmp.lt.s32.totalorder %s37, 3
          %s657 = scalar_select %p656, %s37, 3
          %s658 = smul.addr %s657, 8
          %s659 = scalar_lea.vmem %s0, %s658
        $region84: #{tpu_custom_call.1} parent=79 // pred_fallthru
          _
        // Predicated region
        $region85: #{tpu_custom_call.1} parent=79 // pred_check
          %p660 = pneg %p83
        $region86: #{tpu_custom_call.1} parent=79 // pred_check_branch
          %662 = sbr.rel (%p660) target = $region88
        $region87: #{tpu_custom_call.1} parent=79 // pred_region
          %p663 = scmp.lt.s32.totalorder %s37, 3
          %s664 = scalar_select %p663, %s37, 3
          %s665 = smul.addr %s664, 8
          %s666 = scalar_lea.vmem %s1, %s665
        $region88: #{tpu_custom_call.1} parent=79 // pred_fallthru
          _
        // Predicated region
        $region89: #{tpu_custom_call.1} parent=79 // pred_check
          %p667 = pneg %p109
        $region90: #{tpu_custom_call.1} parent=79 // pred_check_branch
          %669 = sbr.rel (%p667) target = $region92
        $region91: #{tpu_custom_call.1} parent=79 // pred_region
          %s670 = sand.u32 %s99, 1
          %s671 = scalar_lea.sflag [#allocation3], %s670
          %s672 = sand.u32 %s99, 1
          %s673 = smul.addr %s672, 2
          %s674 = scalar_lea.vmem [#allocation2], %s673
          %676 = vsyncadd %s671, 0
          %s677 = smul.addr %s37, 2
          %s678 = scalar_lea.hbm %s2, %s677
          %s680 = sshll.u32 %s678, 4
          %s681 = int_to_ptr.hbm [resolvable:$true] %s680
          %s682 = sshll.u32 %s674, 4
          %s683 = int_to_ptr.vmem [resolvable:$true] %s682
          %685 = dma.hbm_to_vmem [thread:$0]  %s681, 32, %s683, %s671
        $region92: #{tpu_custom_call.1} parent=79 // pred_fallthru
          _
      $region80: #{tpu_custom_call.1} parent=5 // pred_fallthru
        _
      %p686 = scmp.le.s32.totalorder 1, %s37
      %p687 = scmp.lt.s32.totalorder %s37, 5
      %p688 = pnand %p686, %p687
      %p689 = pneg %p688
      // Predicated region
      $region93: #{tpu_custom_call.1} parent=5 // pred_check
        _
      $region94: #{tpu_custom_call.1} parent=5 // pred_check_branch
        %691 = sbr.rel (%p688) target = $region96
      $region95: #{tpu_custom_call.1} parent=5 // pred_region
        %s692 = ssub.s32 %s37, 1
        %s693 = sand.u32 %s102, 1
        %s694 = scalar_lea.sflag [#allocation3], %s693
        %s695 = sand.u32 %s102, 1
        %s696 = smul.addr %s695, 2
        %s697 = scalar_lea.vmem [#allocation2], %s696
        // Predicated region
        $region97: #{tpu_custom_call.1} parent=95 // pred_check
          %p698 = pneg %p115
        $region98: #{tpu_custom_call.1} parent=95 // pred_check_branch
          %700 = sbr.rel (%p698) target = $region100
        $region99: #{tpu_custom_call.1} parent=95 // pred_region
          %702 = dma.done %s694, 32
        $region100: #{tpu_custom_call.1} parent=95 // pred_fallthru
          _
        // Predicated region
        $region101: #{tpu_custom_call.1} parent=95 // pred_check
          %p703 = pneg %p136
        $region102: #{tpu_custom_call.1} parent=95 // pred_check_branch
          %705 = sbr.rel (%p703) target = $region104
        $region103: #{tpu_custom_call.1} parent=95 // pred_region
          %707 = dma.done [#allocation6], 16
        $region104: #{tpu_custom_call.1} parent=95 // pred_fallthru
          _
        // Predicated region
        $region105: #{tpu_custom_call.1} parent=95 // pred_check
          %p708 = pneg %p157
        $region106: #{tpu_custom_call.1} parent=95 // pred_check_branch
          %710 = sbr.rel (%p708) target = $region108
        $region107: #{tpu_custom_call.1} parent=95 // pred_region
          %712 = dma.done [#allocation6], 64
        $region108: #{tpu_custom_call.1} parent=95 // pred_fallthru
          _
        // Predicated region
        $region109: #{tpu_custom_call.1} parent=95 // pred_check
          %p713 = pneg %p178
        $region110: #{tpu_custom_call.1} parent=95 // pred_check_branch
          %715 = sbr.rel (%p713) target = $region112
        $region111: #{tpu_custom_call.1} parent=95 // pred_region
          %717 = dma.done [#allocation9], 16
        $region112: #{tpu_custom_call.1} parent=95 // pred_fallthru
          _
        // Predicated region
        $region113: #{tpu_custom_call.1} parent=95 // pred_check
          %p718 = pneg %p220
        $region114: #{tpu_custom_call.1} parent=95 // pred_check_branch
          %720 = sbr.rel (%p718) target = $region116
        $region115: #{tpu_custom_call.1} parent=95 // pred_region
          %722 = dma.done [#allocation9], 16
        $region116: #{tpu_custom_call.1} parent=95 // pred_fallthru
          _
        // Predicated region
        $region117: #{tpu_custom_call.1} parent=95 // pred_check
          %p723 = pneg %p241
        $region118: #{tpu_custom_call.1} parent=95 // pred_check_branch
          %725 = sbr.rel (%p723) target = $region120
        $region119: #{tpu_custom_call.1} parent=95 // pred_region
          %727 = dma.done [#allocation12], 512
        $region120: #{tpu_custom_call.1} parent=95 // pred_fallthru
          _
        // Predicated region
        $region121: #{tpu_custom_call.1} parent=95 // pred_check
          %p728 = pneg %p262
        $region122: #{tpu_custom_call.1} parent=95 // pred_check_branch
          %730 = sbr.rel (%p728) target = $region124
        $region123: #{tpu_custom_call.1} parent=95 // pred_region
          %732 = dma.done [#allocation12], 16
        $region124: #{tpu_custom_call.1} parent=95 // pred_fallthru
          _
        // Predicated region
        $region125: #{tpu_custom_call.1} parent=95 // pred_check
          %p733 = pneg %p304
        $region126: #{tpu_custom_call.1} parent=95 // pred_check_branch
          %735 = sbr.rel (%p733) target = $region128
        $region127: #{tpu_custom_call.1} parent=95 // pred_region
          %737 = dma.done [#allocation15], 16
        $region128: #{tpu_custom_call.1} parent=95 // pred_fallthru
          _
        // Predicated region
        $region129: #{tpu_custom_call.1} parent=95 // pred_check
          %p738 = pneg %p325
        $region130: #{tpu_custom_call.1} parent=95 // pred_check_branch
          %740 = sbr.rel (%p738) target = $region132
        $region131: #{tpu_custom_call.1} parent=95 // pred_region
          %742 = dma.done [#allocation15], 1024
        $region132: #{tpu_custom_call.1} parent=95 // pred_fallthru
          _
        // Predicated region
        $region133: #{tpu_custom_call.1} parent=95 // pred_check
          %p743 = pneg %p367
        $region134: #{tpu_custom_call.1} parent=95 // pred_check_branch
          %745 = sbr.rel (%p743) target = $region136
        $region135: #{tpu_custom_call.1} parent=95 // pred_region
          %747 = dma.done [#allocation18], 4096
        $region136: #{tpu_custom_call.1} parent=95 // pred_fallthru
          _
        // Predicated region
        $region137: #{tpu_custom_call.1} parent=95 // pred_check
          %p748 = pneg %p409
        $region138: #{tpu_custom_call.1} parent=95 // pred_check_branch
          %750 = sbr.rel (%p748) target = $region140
        $region139: #{tpu_custom_call.1} parent=95 // pred_region
          %752 = dma.done [#allocation18], 512
        $region140: #{tpu_custom_call.1} parent=95 // pred_fallthru
          _
        // Predicated region
        $region141: #{tpu_custom_call.1} parent=95 // pred_check
          %p753 = pneg %p451
        $region142: #{tpu_custom_call.1} parent=95 // pred_check_branch
          %755 = sbr.rel (%p753) target = $region144
        $region143: #{tpu_custom_call.1} parent=95 // pred_region
          %757 = dma.done [#allocation21], 4096
        $region144: #{tpu_custom_call.1} parent=95 // pred_fallthru
          _
        %p758 = scmp.lt.s32.totalorder %s42, 3
        %s759 = scalar_select %p758, %s42, 3
        %s760 = smul.addr %s759, 8
        %s761 = scalar_lea.vmem %s0, %s760
        %p762 = pneg %p63
        %p763 = pneg %p60
        %p764 = scmp.lt.s32.totalorder %s42, 3
        %s765 = scalar_select %p764, %s42, 3
        %s766 = smul.addr %s765, 8
        %s767 = scalar_lea.vmem %s1, %s766
        %p768 = pneg %p89
        %p769 = pneg %p86
        %s770 = sand.u32 %s102, 1
        %s771 = scalar_lea.sflag [#allocation3], %s770
        %s772 = sand.u32 %s102, 1
        %s773 = smul.addr %s772, 2
        %s774 = scalar_lea.vmem [#allocation2], %s773
        %p775 = pneg %p115
        %p776 = pneg %p112
        %p777 = pneg %p136
        %p778 = pneg %p133
        %p779 = pneg %p157
        %p780 = pneg %p154
        %p781 = pneg %p178
        %p782 = pneg %p175
        %p783 = pneg %p199
        %p784 = pneg %p196
        %p785 = pneg %p220
        %p786 = pneg %p217
        %p787 = pneg %p241
        %p788 = pneg %p238
        %p789 = pneg %p262
        %p790 = pneg %p259
        %p791 = pneg %p283
        %p792 = pneg %p280
        %p793 = pneg %p304
        %p794 = pneg %p301
        %p795 = pneg %p325
        %p796 = pneg %p322
        %p797 = pneg %p346
        %p798 = pneg %p343
        %p799 = pneg %p367
        %p800 = pneg %p364
        %p801 = pneg %p388
        %p802 = pneg %p385
        %p803 = pneg %p409
        %p804 = pneg %p406
        %p805 = pneg %p430
        %p806 = pneg %p427
        %p807 = pneg %p451
        %p808 = pneg %p448
        %p809 = pneg %p477
        %p810 = pneg %p474
        %s811 = sand.u32 %s464, 1
        %s812 = scalar_lea.sflag [#allocation4], %s811
        %s813 = sand.u32 %s464, 1
        %s814 = smul.addr %s813, 2
        %s815 = scalar_lea.vmem [#allocation22], %s814
        %p816 = scmp.lt.s32.totalorder %s42, 3
        %s817 = scalar_select %p816, %s42, 3
        %s818 = smul.addr %s817, 8
        %s819 = scalar_lea.vmem %s0, %s818
        %p820 = scmp.lt.s32.totalorder %s42, 3
        %s821 = scalar_select %p820, %s42, 3
        %s822 = smul.addr %s821, 8
        %s823 = scalar_lea.vmem %s1, %s822
        %v824 = vld [vmem:[%s819] sm:$0xff]
        %v825 = vld [vmem:[%s823] sm:$0xff]
        %v826 = vld [vmem:[#allocation7] sm:$0xf]
        %vm827 = vcmask 31744
        %v829 = vsel %vm827, %v824, 0
        %vm831 = vcmask 1043456
        %v833 = vsel %vm831, %v826, 0
        %835 = vmatpush.msra.mxu0 0.0
        %836 = vmatpush.msra.mxu0 0.0
        %837 = vmatpush.msra.mxu0 0.0
        %838 = vmatpush.msra.mxu0 0.0
        %839 = vmatpush.msra.mxu0 0.0
        %840 = vmatpush.msra.mxu0 0.0
        %841 = vmatpush.msra.mxu0 0.0
        %842 = vmatpush.msra.mxu0 0.0
        %843 = vmatpush.msra.mxu0 0.0
        %844 = vmatpush.msra.mxu0 0.0
        %845 = vmatpush.msra.mxu0 0.0
        %846 = vmatpush.msra.mxu0 0.0
        %847 = vmatpush.msra.mxu0 0.0
        %848 = vmatpush.msra.mxu0 0.0
        %849 = vmatpush.msra.mxu0 0.0
        %850 = vmatpush.msra.mxu0 %v833
        %851 = vmatmul.f32.gmra.mxu0 %v829
        %v852 = vpop.f32.mrf.mxu0
        %v853 = vadd.f32 0.0, %v852
        %854 = vdwg.mxu0
        %v855 = vld [vmem:[#allocation8] sm:$0x1]
        %v857 = vperm.slane %v855, 0
        %vm859 = vcmask 64512
        %v861 = vsel %vm859, %v825, 0
        %863 = vmatpush.msra.mxu0 0.0
        %864 = vmatpush.msra.mxu0 0.0
        %865 = vmatpush.msra.mxu0 0.0
        %866 = vmatpush.msra.mxu0 0.0
        %867 = vmatpush.msra.mxu0 0.0
        %868 = vmatpush.msra.mxu0 0.0
        %869 = vmatpush.msra.mxu0 0.0
        %870 = vmatpush.msra.mxu0 0.0
        %871 = vmatpush.msra.mxu0 0.0
        %872 = vmatpush.msra.mxu0 0.0
        %873 = vmatpush.msra.mxu0 0.0
        %874 = vmatpush.msra.mxu0 0.0
        %875 = vmatpush.msra.mxu0 0.0
        %876 = vmatpush.msra.mxu0 0.0
        %877 = vmatpush.msra.mxu0 0.0
        %878 = vmatpush.msra.mxu0 %v853
        %879 = vmatmul.f32.gmra.mxu0 %v861
        %v880 = vpop.f32.mrf.mxu0
        %v881 = vadd.f32 %v857, %v880
        %882 = vdwg.mxu0
        %v883 = vmax.f32 %v881, 0.0
        %v884 = vld [vmem:[%s6] sm:$0xff]
        %v885 = vld [vmem:[%s6 + $0x8] sm:$0xff]
        %vm886 = vcmask 130048
        %v888 = vsel %vm886, %v883, 0
        %890 = vmatpush.msra.mxu0 0.0
        %891 = vmatpush.msra.mxu0 0.0
        %892 = vmatpush.msra.mxu0 0.0
        %893 = vmatpush.msra.mxu0 0.0
        %894 = vmatpush.msra.mxu0 0.0
        %895 = vmatpush.msra.mxu0 0.0
        %896 = vmatpush.msra.mxu0 0.0
        %897 = vmatpush.msra.mxu0 0.0
        %898 = vmatpush.msra.mxu0 0.0
        %899 = vmatpush.msra.mxu0 0.0
        %900 = vmatpush.msra.mxu0 0.0
        %901 = vmatpush.msra.mxu0 0.0
        %902 = vmatpush.msra.mxu0 0.0
        %903 = vmatpush.msra.mxu0 0.0
        %904 = vmatpush.msra.mxu0 %v885
        %905 = vmatpush.msra.mxu0 %v884
        %906 = vmatmul.f32.gmra.mxu0 %v888
        %v907 = vpop.f32.mrf.mxu0
        %v908 = vadd.f32 0.0, %v907
        %909 = vdwg.mxu0
        %v910 = vld [vmem:[#allocation10] sm:$0x1]
        %v912 = vperm.slane %v910, 0
        %914 = vmatpush.msra.mxu0 0.0
        %915 = vmatpush.msra.mxu0 0.0
        %916 = vmatpush.msra.mxu0 0.0
        %917 = vmatpush.msra.mxu0 0.0
        %918 = vmatpush.msra.mxu0 0.0
        %919 = vmatpush.msra.mxu0 0.0
        %920 = vmatpush.msra.mxu0 0.0
        %921 = vmatpush.msra.mxu0 0.0
        %922 = vmatpush.msra.mxu0 0.0
        %923 = vmatpush.msra.mxu0 0.0
        %924 = vmatpush.msra.mxu0 0.0
        %925 = vmatpush.msra.mxu0 0.0
        %926 = vmatpush.msra.mxu0 0.0
        %927 = vmatpush.msra.mxu0 0.0
        %928 = vmatpush.msra.mxu0 0.0
        %929 = vmatpush.msra.mxu0 %v908
        %930 = vmatmul.f32.gmra.mxu0 %v861
        %v931 = vpop.f32.mrf.mxu0
        %v932 = vadd.f32 %v912, %v931
        %933 = vdwg.mxu0
        %v934 = vld [vmem:[#allocation11] sm:$0xff]
        %v935 = vld [vmem:[#allocation11 + $0x8] sm:$0xff]
        %v936 = vld [vmem:[#allocation11 + $0x10] sm:$0xff]
        %v937 = vld [vmem:[#allocation11 + $0x18] sm:$0xff]
        %vm938 = vcmask 261120
        %v940 = vsel %vm938, %v932, 0
        %942 = vmatpush.msra.mxu0 0.0
        %943 = vmatpush.msra.mxu0 0.0
        %944 = vmatpush.msra.mxu0 0.0
        %945 = vmatpush.msra.mxu0 0.0
        %946 = vmatpush.msra.mxu0 0.0
        %947 = vmatpush.msra.mxu0 0.0
        %948 = vmatpush.msra.mxu0 0.0
        %949 = vmatpush.msra.mxu0 0.0
        %950 = vmatpush.msra.mxu0 0.0
        %951 = vmatpush.msra.mxu0 0.0
        %952 = vmatpush.msra.mxu0 0.0
        %953 = vmatpush.msra.mxu0 0.0
        %954 = vmatpush.msra.mxu0 %v937
        %955 = vmatpush.msra.mxu0 %v936
        %956 = vmatpush.msra.mxu0 %v935
        %957 = vmatpush.msra.mxu0 %v934
        %958 = vmatmul.f32.gmra.mxu0 %v940
        %v959 = vpop.f32.mrf.mxu0
        %v960 = vadd.f32 0.0, %v959
        %961 = vdwg.mxu0
        %v962 = vld [vmem:[#allocation13] sm:$0x1]
        %v964 = vperm.slane %v962, 0
        %966 = vmatpush.msra.mxu0 0.0
        %967 = vmatpush.msra.mxu0 0.0
        %968 = vmatpush.msra.mxu0 0.0
        %969 = vmatpush.msra.mxu0 0.0
        %970 = vmatpush.msra.mxu0 0.0
        %971 = vmatpush.msra.mxu0 0.0
        %972 = vmatpush.msra.mxu0 0.0
        %973 = vmatpush.msra.mxu0 0.0
        %974 = vmatpush.msra.mxu0 0.0
        %975 = vmatpush.msra.mxu0 0.0
        %976 = vmatpush.msra.mxu0 0.0
        %977 = vmatpush.msra.mxu0 0.0
        %978 = vmatpush.msra.mxu0 0.0
        %979 = vmatpush.msra.mxu0 0.0
        %980 = vmatpush.msra.mxu0 0.0
        %981 = vmatpush.msra.mxu0 %v960
        %982 = vmatmul.f32.gmra.mxu0 %v861
        %v983 = vpop.f32.mrf.mxu0
        %v984 = vadd.f32 %v964, %v983
        %985 = vdwg.mxu0
        %v986 = vld [vmem:[#allocation5] sm:$0x1]
        %v988 = vsel %vm859, %v986, 0
        %990 = vmatpush.msra.mxu0 0.0
        %991 = vmatpush.msra.mxu0 0.0
        %992 = vmatpush.msra.mxu0 0.0
        %993 = vmatpush.msra.mxu0 0.0
        %994 = vmatpush.msra.mxu0 0.0
        %995 = vmatpush.msra.mxu0 0.0
        %996 = vmatpush.msra.mxu0 0.0
        %997 = vmatpush.msra.mxu0 0.0
        %998 = vmatpush.msra.mxu0 0.0
        %999 = vmatpush.msra.mxu0 0.0
        %1000 = vmatpush.msra.mxu0 0.0
        %1001 = vmatpush.msra.mxu0 0.0
        %1002 = vmatpush.msra.mxu0 0.0
        %1003 = vmatpush.msra.mxu0 0.0
        %1004 = vmatpush.msra.mxu0 0.0
        %1005 = vmatpush.msra.mxu0 %v984
        %1006 = vmatmul.f32.gmra.mxu0 %v988
        %v1007 = vpop.f32.mrf.mxu0
        %v1008 = vadd.f32 0.0, %v1007
        %1009 = vdwg.mxu0
        %v1010 = vld [vmem:[#allocation19] sm:$0xff]
        %v1011 = vld [vmem:[#allocation19 + $0x8] sm:$0xff]
        %v1012 = vld [vmem:[#allocation19 + $0x10] sm:$0xff]
        %v1013 = vld [vmem:[#allocation19 + $0x18] sm:$0xff]
        %v1014 = vld [vmem:[%s17] sm:$0x1]
        %v1016 = vsel %vm938, %v1008, 0
        %1018 = vmatpush.msra.mxu0 0.0
        %1019 = vmatpush.msra.mxu0 0.0
        %1020 = vmatpush.msra.mxu0 0.0
        %1021 = vmatpush.msra.mxu0 0.0
        %1022 = vmatpush.msra.mxu0 0.0
        %1023 = vmatpush.msra.mxu0 0.0
        %1024 = vmatpush.msra.mxu0 0.0
        %1025 = vmatpush.msra.mxu0 0.0
        %1026 = vmatpush.msra.mxu0 0.0
        %1027 = vmatpush.msra.mxu0 0.0
        %1028 = vmatpush.msra.mxu0 0.0
        %1029 = vmatpush.msra.mxu0 0.0
        %1030 = vmatpush.msra.mxu0 %v1013
        %1031 = vmatpush.msra.mxu0 %v1012
        %1032 = vmatpush.msra.mxu0 %v1011
        %1033 = vmatpush.msra.mxu0 %v1010
        %1034 = vmatmul.f32.gmra.mxu0 %v1016
        %v1035 = vpop.f32.mrf.mxu0
        %v1036 = vadd.f32 %v1014, %v1035
        %1037 = vdwg.mxu0
        %v1038 = vld [vmem:[%s697] sm:$0x3]
        %v1039 = vld [vmem:[%s10] sm:$0x3f]
        %v1040 = vld [vmem:[#allocation14] sm:$0x1]
        %v1042 = vperm.slane %v1040, 0
        %vm1044 = vcmask 48128
        %v1046 = vsel %vm1044, %v1038, 0
        %vm1048 = vcmask 1045504
        %v1050 = vsel %vm1048, %v1039, 0
        %1052 = vmatpush.msra.mxu0 0.0
        %1053 = vmatpush.msra.mxu0 0.0
        %1054 = vmatpush.msra.mxu0 0.0
        %1055 = vmatpush.msra.mxu0 0.0
        %1056 = vmatpush.msra.mxu0 0.0
        %1057 = vmatpush.msra.mxu0 0.0
        %1058 = vmatpush.msra.mxu0 0.0
        %1059 = vmatpush.msra.mxu0 0.0
        %1060 = vmatpush.msra.mxu0 0.0
        %1061 = vmatpush.msra.mxu0 0.0
        %1062 = vmatpush.msra.mxu0 0.0
        %1063 = vmatpush.msra.mxu0 0.0
        %1064 = vmatpush.msra.mxu0 0.0
        %1065 = vmatpush.msra.mxu0 0.0
        %1066 = vmatpush.msra.mxu0 0.0
        %1067 = vmatpush.msra.mxu0 %v1050
        %1068 = vmatmul.f32.gmra.mxu0 %v1046
        %v1069 = vpop.f32.mrf.mxu0
        %v1070 = vadd.f32 %v1042, %v1069
        %1071 = vdwg.mxu0
        %v1072 = vmax.f32 %v1070, 0.0
        %v1073 = vld [vmem:[#allocation16] sm:$0xff]
        %v1074 = vld [vmem:[#allocation16 + $0x8] sm:$0xff]
        %v1075 = vld [vmem:[#allocation16 + $0x10] sm:$0xff]
        %v1076 = vld [vmem:[#allocation16 + $0x18] sm:$0xff]
        %v1077 = vld [vmem:[#allocation16 + $0x20] sm:$0xff]
        %v1078 = vld [vmem:[#allocation16 + $0x28] sm:$0xff]
        %v1079 = vld [vmem:[#allocation16 + $0x30] sm:$0xff]
        %v1080 = vld [vmem:[#allocation16 + $0x38] sm:$0xff]
        %v1081 = vld [vmem:[%s13] sm:$0x1]
        %v1083 = vperm.slane %v1081, 0
        %vm1085 = vcmask 523264
        %v1087 = vsel %vm1085, %v1072, 0
        %1089 = vmatpush.msra.mxu0 0.0
        %1090 = vmatpush.msra.mxu0 0.0
        %1091 = vmatpush.msra.mxu0 0.0
        %1092 = vmatpush.msra.mxu0 0.0
        %1093 = vmatpush.msra.mxu0 0.0
        %1094 = vmatpush.msra.mxu0 0.0
        %1095 = vmatpush.msra.mxu0 0.0
        %1096 = vmatpush.msra.mxu0 0.0
        %1097 = vmatpush.msra.mxu0 %v1080
        %1098 = vmatpush.msra.mxu0 %v1079
        %1099 = vmatpush.msra.mxu0 %v1078
        %1100 = vmatpush.msra.mxu0 %v1077
        %1101 = vmatpush.msra.mxu0 %v1076
        %1102 = vmatpush.msra.mxu0 %v1075
        %1103 = vmatpush.msra.mxu0 %v1074
        %1104 = vmatpush.msra.mxu0 %v1073
        %1105 = vmatmul.f32.gmra.mxu0 %v1087
        %v1106 = vpop.f32.mrf.mxu0
        %v1107 = vadd.f32 %v1083, %v1106
        %1108 = vdwg.mxu0
        %v1109 = vmax.f32 %v1107, 0.0
        %v1110 = vld [vmem:[#allocation17] sm:$0xff]
        %v1111 = vld [vmem:[#allocation17 + $0x8] sm:$0xff]
        %v1112 = vld [vmem:[#allocation17 + $0x10] sm:$0xff]
        %v1113 = vld [vmem:[#allocation17 + $0x18] sm:$0xff]
        %v1114 = vld [vmem:[#allocation17 + $0x20] sm:$0xff]
        %v1115 = vld [vmem:[#allocation17 + $0x28] sm:$0xff]
        %v1116 = vld [vmem:[#allocation17 + $0x30] sm:$0xff]
        %v1117 = vld [vmem:[#allocation17 + $0x38] sm:$0xff]
        %v1118 = vld [vmem:[#allocation17 + $0x40] sm:$0xff]
        %v1119 = vld [vmem:[#allocation17 + $0x48] sm:$0xff]
        %v1120 = vld [vmem:[#allocation17 + $0x50] sm:$0xff]
        %v1121 = vld [vmem:[#allocation17 + $0x58] sm:$0xff]
        %v1122 = vld [vmem:[#allocation17 + $0x60] sm:$0xff]
        %v1123 = vld [vmem:[#allocation17 + $0x68] sm:$0xff]
        %v1124 = vld [vmem:[#allocation17 + $0x70] sm:$0xff]
        %v1125 = vld [vmem:[#allocation17 + $0x78] sm:$0xff]
        %v1126 = vld [vmem:[#allocation17 + $0x80] sm:$0xff]
        %v1127 = vld [vmem:[#allocation17 + $0x88] sm:$0xff]
        %v1128 = vld [vmem:[#allocation17 + $0x90] sm:$0xff]
        %v1129 = vld [vmem:[#allocation17 + $0x98] sm:$0xff]
        %v1130 = vld [vmem:[#allocation17 + $0xa0] sm:$0xff]
        %v1131 = vld [vmem:[#allocation17 + $0xa8] sm:$0xff]
        %v1132 = vld [vmem:[#allocation17 + $0xb0] sm:$0xff]
        %v1133 = vld [vmem:[#allocation17 + $0xb8] sm:$0xff]
        %v1134 = vld [vmem:[#allocation17 + $0xc0] sm:$0xff]
        %v1135 = vld [vmem:[#allocation17 + $0xc8] sm:$0xff]
        %v1136 = vld [vmem:[#allocation17 + $0xd0] sm:$0xff]
        %v1137 = vld [vmem:[#allocation17 + $0xd8] sm:$0xff]
        %v1138 = vld [vmem:[#allocation17 + $0xe0] sm:$0xff]
        %v1139 = vld [vmem:[#allocation17 + $0xe8] sm:$0xff]
        %v1140 = vld [vmem:[#allocation17 + $0xf0] sm:$0xff]
        %v1141 = vld [vmem:[#allocation17 + $0xf8] sm:$0xff]
        %v1142 = vld [vmem:[%s15] sm:$0x3]
        %v1144 = vperm.slane %v1142, 0
        %v1145 = vperm.slane %v1142, 1
        %1148 = vmatpush.msra.mxu0 %v1140
        %1149 = vmatpush.msra.mxu0 %v1138
        %1150 = vmatpush.msra.mxu0 %v1136
        %1151 = vmatpush.msra.mxu0 %v1134
        %1152 = vmatpush.msra.mxu0 %v1132
        %1153 = vmatpush.msra.mxu0 %v1130
        %1154 = vmatpush.msra.mxu0 %v1128
        %1155 = vmatpush.msra.mxu0 %v1126
        %1156 = vmatpush.msra.mxu0 %v1124
        %1157 = vmatpush.msra.mxu0 %v1122
        %1158 = vmatpush.msra.mxu0 %v1120
        %1159 = vmatpush.msra.mxu0 %v1118
        %1160 = vmatpush.msra.mxu0 %v1116
        %1161 = vmatpush.msra.mxu0 %v1114
        %1162 = vmatpush.msra.mxu0 %v1112
        %1163 = vmatpush.msra.mxu0 %v1110
        %1164 = vmatmul.f32.gmra.mxu0 %v1109
        %v1165 = vpop.f32.mrf.mxu0
        %v1166 = vadd.f32 %v1144, %v1165
        %1167 = vdwg.mxu0
        %1168 = vmatpush.msra.mxu0 %v1141
        %1169 = vmatpush.msra.mxu0 %v1139
        %1170 = vmatpush.msra.mxu0 %v1137
        %1171 = vmatpush.msra.mxu0 %v1135
        %1172 = vmatpush.msra.mxu0 %v1133
        %1173 = vmatpush.msra.mxu0 %v1131
        %1174 = vmatpush.msra.mxu0 %v1129
        %1175 = vmatpush.msra.mxu0 %v1127
        %1176 = vmatpush.msra.mxu0 %v1125
        %1177 = vmatpush.msra.mxu0 %v1123
        %1178 = vmatpush.msra.mxu0 %v1121
        %1179 = vmatpush.msra.mxu0 %v1119
        %1180 = vmatpush.msra.mxu0 %v1117
        %1181 = vmatpush.msra.mxu0 %v1115
        %1182 = vmatpush.msra.mxu0 %v1113
        %1183 = vmatpush.msra.mxu0 %v1111
        %1184 = vmatmul.f32.gmra.mxu0 %v1109
        %v1185 = vpop.f32.mrf.mxu0
        %v1186 = vadd.f32 %v1145, %v1185
        %1187 = vdwg.mxu0
        %v1188 = vmax.f32 %v1166, 0.0
        %v1189 = vmax.f32 %v1186, 0.0
        %v1190 = vld [vmem:[#allocation20] sm:$0xff]
        %v1191 = vld [vmem:[#allocation20 + $0x8] sm:$0xff]
        %v1192 = vld [vmem:[#allocation20 + $0x10] sm:$0xff]
        %v1193 = vld [vmem:[#allocation20 + $0x18] sm:$0xff]
        %v1194 = vld [vmem:[#allocation20 + $0x20] sm:$0xff]
        %v1195 = vld [vmem:[#allocation20 + $0x28] sm:$0xff]
        %v1196 = vld [vmem:[#allocation20 + $0x30] sm:$0xff]
        %v1197 = vld [vmem:[#allocation20 + $0x38] sm:$0xff]
        %v1198 = vld [vmem:[#allocation20 + $0x40] sm:$0xff]
        %v1199 = vld [vmem:[#allocation20 + $0x48] sm:$0xff]
        %v1200 = vld [vmem:[#allocation20 + $0x50] sm:$0xff]
        %v1201 = vld [vmem:[#allocation20 + $0x58] sm:$0xff]
        %v1202 = vld [vmem:[#allocation20 + $0x60] sm:$0xff]
        %v1203 = vld [vmem:[#allocation20 + $0x68] sm:$0xff]
        %v1204 = vld [vmem:[#allocation20 + $0x70] sm:$0xff]
        %v1205 = vld [vmem:[#allocation20 + $0x78] sm:$0xff]
        %v1206 = vld [vmem:[#allocation20 + $0x80] sm:$0xff]
        %v1207 = vld [vmem:[#allocation20 + $0x88] sm:$0xff]
        %v1208 = vld [vmem:[#allocation20 + $0x90] sm:$0xff]
        %v1209 = vld [vmem:[#allocation20 + $0x98] sm:$0xff]
        %v1210 = vld [vmem:[#allocation20 + $0xa0] sm:$0xff]
        %v1211 = vld [vmem:[#allocation20 + $0xa8] sm:$0xff]
        %v1212 = vld [vmem:[#allocation20 + $0xb0] sm:$0xff]
        %v1213 = vld [vmem:[#allocation20 + $0xb8] sm:$0xff]
        %v1214 = vld [vmem:[#allocation20 + $0xc0] sm:$0xff]
        %v1215 = vld [vmem:[#allocation20 + $0xc8] sm:$0xff]
        %v1216 = vld [vmem:[#allocation20 + $0xd0] sm:$0xff]
        %v1217 = vld [vmem:[#allocation20 + $0xd8] sm:$0xff]
        %v1218 = vld [vmem:[#allocation20 + $0xe0] sm:$0xff]
        %v1219 = vld [vmem:[#allocation20 + $0xe8] sm:$0xff]
        %v1220 = vld [vmem:[#allocation20 + $0xf0] sm:$0xff]
        %v1221 = vld [vmem:[#allocation20 + $0xf8] sm:$0xff]
        %v1222 = vperm.slane %v1036, 0
        %1223 = vmatpush.msra.mxu0 %v1205
        %1224 = vmatpush.msra.mxu0 %v1204
        %1225 = vmatpush.msra.mxu0 %v1203
        %1226 = vmatpush.msra.mxu0 %v1202
        %1227 = vmatpush.msra.mxu0 %v1201
        %1228 = vmatpush.msra.mxu0 %v1200
        %1229 = vmatpush.msra.mxu0 %v1199
        %1230 = vmatpush.msra.mxu0 %v1198
        %1231 = vmatpush.msra.mxu0 %v1197
        %1232 = vmatpush.msra.mxu0 %v1196
        %1233 = vmatpush.msra.mxu0 %v1195
        %1234 = vmatpush.msra.mxu0 %v1194
        %1235 = vmatpush.msra.mxu0 %v1193
        %1236 = vmatpush.msra.mxu0 %v1192
        %1237 = vmatpush.msra.mxu0 %v1191
        %1238 = vmatpush.msra.mxu0 %v1190
        %1239 = vmatmul.f32.gmra.mxu0 %v1188
        %v1240 = vpop.f32.mrf.mxu0
        %v1241 = vadd.f32 %v1222, %v1240
        %1242 = vdwg.mxu0
        %1243 = vmatpush.msra.mxu0 %v1221
        %1244 = vmatpush.msra.mxu0 %v1220
        %1245 = vmatpush.msra.mxu0 %v1219
        %1246 = vmatpush.msra.mxu0 %v1218
        %1247 = vmatpush.msra.mxu0 %v1217
        %1248 = vmatpush.msra.mxu0 %v1216
        %1249 = vmatpush.msra.mxu0 %v1215
        %1250 = vmatpush.msra.mxu0 %v1214
        %1251 = vmatpush.msra.mxu0 %v1213
        %1252 = vmatpush.msra.mxu0 %v1212
        %1253 = vmatpush.msra.mxu0 %v1211
        %1254 = vmatpush.msra.mxu0 %v1210
        %1255 = vmatpush.msra.mxu0 %v1209
        %1256 = vmatpush.msra.mxu0 %v1208
        %1257 = vmatpush.msra.mxu0 %v1207
        %1258 = vmatpush.msra.mxu0 %v1206
        %1259 = vmatmul.f32.gmra.mxu0 %v1189
        %v1260 = vpop.f32.mrf.mxu0
        %v1261 = vadd.f32 %v1241, %v1260
        %1262 = vdwg.mxu0
        %v1263 = vmax.f32 %v1261, 0.0
        %1264 = vst [vmem:[%s815] sm:$0x3] %v1263
        %s1265 = sand.u32 %s464, 1
        %s1266 = scalar_lea.sflag [#allocation4], %s1265
        %s1267 = sand.u32 %s464, 1
        %s1268 = smul.addr %s1267, 2
        %s1269 = scalar_lea.vmem [#allocation22], %s1268
        // Predicated region
        $region145: #{tpu_custom_call.1} parent=95 // pred_check
          %p1270 = pneg %p474
        $region146: #{tpu_custom_call.1} parent=95 // pred_check_branch
          %1272 = sbr.rel (%p1270) target = $region148
        $region147: #{tpu_custom_call.1} parent=95 // pred_region
          %1274 = vsyncadd %s1266, 0
          %s1275 = smul.addr %s42, 2
          %s1276 = scalar_lea.hbm %s19, %s1275
          %s1278 = sshll.u32 %s1269, 4
          %s1279 = int_to_ptr.vmem [resolvable:$true] %s1278
          %s1280 = sshll.u32 %s1276, 4
          %s1281 = int_to_ptr.hbm [resolvable:$true] %s1280
          %1283 = dma.vmem_to_hbm [thread:$0]  %s1279, 32, %s1281, %s1266
        $region148: #{tpu_custom_call.1} parent=95 // pred_fallthru
          _
      $region96: #{tpu_custom_call.1} parent=5 // pred_fallthru
        _
      %p1284 = scmp.le.s32.totalorder 2, %s37
      // Predicated region
      $region149: #{tpu_custom_call.1} parent=5 // pred_check
        %p1285 = pneg %p1284
      $region150: #{tpu_custom_call.1} parent=5 // pred_check_branch
        %1287 = sbr.rel (%p1285) target = $region152
      $region151: #{tpu_custom_call.1} parent=5 // pred_region
        %s1288 = ssub.s32 %s37, 2
        // Predicated region
        $region153: #{tpu_custom_call.1} parent=151 // pred_check
          %p1289 = pneg %p480
        $region154: #{tpu_custom_call.1} parent=151 // pred_check_branch
          %1291 = sbr.rel (%p1289) target = $region156
        $region155: #{tpu_custom_call.1} parent=151 // pred_region
          %s1292 = sand.u32 %s465, 1
          %s1293 = scalar_lea.sflag [#allocation4], %s1292
          %s1294 = sand.u32 %s465, 1
          %s1295 = smul.addr %s1294, 2
          %s1296 = scalar_lea.vmem [#allocation22], %s1295
          %1298 = dma.done %s1293, 32
        $region156: #{tpu_custom_call.1} parent=151 // pred_fallthru
          _
      $region152: #{tpu_custom_call.1} parent=5 // pred_fallthru
        _
    $region6: #{tpu_custom_call.1} parent=1 // loop_footer
      %s41 = sadd.s32 1, %s37
    $region7: #{tpu_custom_call.1} parent=1 // loop_footer_branch
      %36 = sbr.rel target = $region3
    $region8: #{tpu_custom_call.1} parent=1 // loop_exit
      _
    %1299 = vsyncpa [#allocation3], 1
    %s1300 = scalar_lea.sflag [#allocation3], 1
    %1301 = vsyncpa %s1300, 1
    %1302 = vsyncpa [#allocation6], 1
    %1303 = vsyncpa [#allocation9], 1
    %1304 = vsyncpa [#allocation12], 1
    %1305 = vsyncpa [#allocation15], 1
    %1306 = vsyncpa [#allocation18], 1
    %1307 = vsyncpa [#allocation21], 1
    %1308 = vsyncpa [#allocation4], 1
    %s1309 = scalar_lea.sflag [#allocation4], 1
    %1310 = vsyncpa %s1309, 1

</llo_original>
